<compile_context>
chip_gen: v6e
topology: v6e:2x2x1
jax: 0.10.0
libtpu: 0.0.40
codegen_flags: <defaults>
</compile_context>

<pallas_src>
import functools

import jax
import jax.numpy as jnp
from jax.experimental import pallas as pl
from jax.experimental.pallas import tpu as pltpu

_INNER_MLP_MULT = 2
_BN_EPS = 1e-5
_LANE = 128


def _round_up(x, m):
    return (x + m - 1) // m * m


def _pad_axis(a, size, axis):
    pad = size - a.shape[axis]
    if pad == 0:
        return a
    widths = [(0, 0)] * a.ndim
    widths[axis] = (0, pad)
    return jnp.pad(a, widths)


# --------------------------------------------------------------------------
# Pallas kernel: both fused MLPs (Linear->BN->ReLU->Linear->BN->ReLU[->Drop])
# --------------------------------------------------------------------------
def _edge_node_kernel(
    # edge branch activations (un-concatenated 7H pieces)
    er_ref, ee_ref, ne_ref,
    # edge branch params (w1 split along K, bf16 weights, f32 BN params)
    ew1a_ref, ew1b_ref, ew1c_ref, eg1_ref, eb1_ref, ew2_ref, eg2_ref, eb2_ref,
    # dropout random bits for the edge output
    bits_ref,
    # node branch activations
    nr_ref, en_ref,
    # node branch params
    nw1a_ref, nw1b_ref, ng1_ref, nb1_ref, nw2_ref, ng2_ref, nb2_ref,
    # outputs
    eo_ref, no_ref,
    *, drop_threshold, inv_keep):
    bf16 = jnp.bfloat16

    def bn_relu(z, g_ref, b_ref):
        # single-pass batch stats (biased var, as PyTorch train-mode BN)
        mean = jnp.mean(z, axis=0, keepdims=True)
        msq = jnp.mean(z * z, axis=0, keepdims=True)
        var = msq - mean * mean
        zn = (z - mean) * jax.lax.rsqrt(var + _BN_EPS) * g_ref[...] + b_ref[...]
        return jnp.maximum(zn, 0.0)

    # ----- edge MLP: split-K first matmul avoids the (2E,7H) concat ---------
    h = jnp.dot(er_ref[...].astype(bf16), ew1a_ref[...],
                preferred_element_type=jnp.float32)
    h = h + jnp.dot(ee_ref[...].astype(bf16), ew1b_ref[...],
                    preferred_element_type=jnp.float32)
    h = h + jnp.dot(ne_ref[...].astype(bf16), ew1c_ref[...],
                    preferred_element_type=jnp.float32)
    h = bn_relu(h, eg1_ref, eb1_ref)
    y = jnp.dot(h.astype(bf16), ew2_ref[...], preferred_element_type=jnp.float32)
    y = bn_relu(y, eg2_ref, eb2_ref)
    if drop_threshold > 0:
        keep = bits_ref[...] >= jnp.uint32(drop_threshold)
        y = jnp.where(keep, y * inv_keep, 0.0)
    eo_ref[...] = y

    # ----- node MLP (reference forward applies no dropout to node_out) ------
    hn = jnp.dot(nr_ref[...].astype(bf16), nw1a_ref[...],
                 preferred_element_type=jnp.float32)
    hn = hn + jnp.dot(en_ref[...].astype(bf16), nw1b_ref[...],
                      preferred_element_type=jnp.float32)
    hn = bn_relu(hn, ng1_ref, nb1_ref)
    yn = jnp.dot(hn.astype(bf16), nw2_ref[...], preferred_element_type=jnp.float32)
    yn = bn_relu(yn, ng2_ref, nb2_ref)
    no_ref[...] = yn


# --------------------------------------------------------------------------
# Parameter prep: split w1 along K, pad lane dims to 128, cast weights to bf16
# --------------------------------------------------------------------------
def _prep_mlp_params(mlp_params, split_sizes, hidden):
    w1, g1, b1, w2, g2, b2 = mlp_params
    inner = w1.shape[1]
    inner_p = _round_up(inner, _LANE)
    out_p = _round_up(hidden, _LANE)

    pieces = []
    start = 0
    for s in split_sizes:
        piece = _pad_axis(w1[start:start + s], inner_p, 1).astype(jnp.bfloat16)
        pieces.append(piece)
        start += s

    g1p = _pad_axis(g1, inner_p, 1)
    b1p = _pad_axis(b1, inner_p, 1)
    w2p = _pad_axis(_pad_axis(w2, inner_p, 0), out_p, 1).astype(jnp.bfloat16)
    g2p = _pad_axis(g2, out_p, 1)
    b2p = _pad_axis(b2, out_p, 1)
    return pieces, (g1p, b1p, w2p, g2p, b2p), out_p


# --------------------------------------------------------------------------
# ptens gather ops (graph-structure indexing; plain-JAX glue)
# --------------------------------------------------------------------------
# TODO(synk): the 1->1 gather below reproduces the ptens linmaps exactly only
# for simple graphs (no parallel edges / self-loops); general ptens gathers
# have no clean Pallas equivalent (data-dependent, ragged intersections).
def _node_pool(src, flat, n_nodes):
    # dense one-hot matmul instead of segment_sum: MXU-friendly, no scatter.
    onehot = (jnp.arange(n_nodes, dtype=flat.dtype)[:, None]
              == flat[None, :]).astype(src.dtype)
    return onehot @ src                                           # (N, C)


def _gather_node_to_edge(x, edges):
    # ptens 0->1 gather onto the edge subgraph: row 2e+k holds node edges[e,k].
    return x[edges.reshape(-1)]                                   # (2E, C)


def _gather_edge_to_edge(src, edges, n_nodes):
    # ptens 1->1 gather over the edge subgraph (broadcast-of-intersection-sum,
    # identity-on-intersection), summed over intersecting sources; C -> 2C.
    e = edges.shape[0]
    flat = edges.reshape(-1)
    per_node = _node_pool(src, flat, n_nodes)                     # (N, C)
    s_at = per_node[flat]                                         # (2E, C)
    other = src.reshape(e, 2, -1)[:, ::-1, :].reshape(2 * e, -1)  # same-edge other atom
    return jnp.concatenate([s_at + other, s_at], axis=-1)         # (2E, 2C)


def _gather_edge_to_node(src, edges, n_nodes):
    # ptens 1->0 gather onto the trivial (node) subgraph.
    return _node_pool(src, edges.reshape(-1), n_nodes)            # (N, C)


# --------------------------------------------------------------------------
# Edge_node forward
# --------------------------------------------------------------------------
@functools.partial(jax.jit, static_argnums=(3,), static_argnames=("dropout_rate",))
def edge_node_forward(node_rep, edge_rep, edges, n_nodes, params, *,
                      dropout_rate, rng_key):
    hidden = node_rep.shape[1]

    node2edge = _gather_node_to_edge(node_rep, edges)                 # (2E, H)
    node2edge = _gather_edge_to_edge(node2edge, edges, n_nodes)       # (2E, 2H)
    edge2edge = _gather_edge_to_edge(edge_rep, edges, n_nodes)        # (2E, 2H)
    edge2edge = _gather_edge_to_edge(edge2edge, edges, n_nodes)       # (2E, 4H)
    edge2node = jnp.concatenate([edge2edge, node2edge], axis=-1)      # cat_channels (2E, 6H)
    edge2node = _gather_edge_to_node(edge2node, edges, n_nodes)       # (N, 6H)

    # edge_in = [edge_rep | edge2edge | node2edge]  (never materialized)
    e_pieces, e_rest, out_p = _prep_mlp_params(
        params["edge_mlp"], (hidden, 4 * hidden, 2 * hidden), hidden)
    # node_in = [node_rep | edge2node]              (never materialized)
    n_pieces, n_rest, _ = _prep_mlp_params(
        params["node_mlp"], (hidden, 6 * hidden), hidden)

    rows_e = edge_rep.shape[0]
    rows_n = node_rep.shape[0]

    drop_threshold = 0
    inv_keep = 1.0
    if dropout_rate > 0.0:
        drop_threshold = min(int(round(dropout_rate * (1 << 32))), (1 << 32) - 1)
        inv_keep = 1.0 / (1.0 - dropout_rate)
        bits = jax.random.bits(rng_key, (rows_e, out_p), dtype=jnp.uint32)
    else:
        bits = jnp.zeros((rows_e, out_p), dtype=jnp.uint32)

    kernel = functools.partial(_edge_node_kernel,
                               drop_threshold=drop_threshold,
                               inv_keep=float(inv_keep))
    vmem = pl.BlockSpec(memory_space=pltpu.MemorySpace.VMEM)
    n_inputs = 21

    edge_out_p, node_out_p = pl.pallas_call(
        kernel,
        out_shape=(jax.ShapeDtypeStruct((rows_e, out_p), jnp.float32),
                   jax.ShapeDtypeStruct((rows_n, out_p), jnp.float32)),
        in_specs=[vmem] * n_inputs,
        out_specs=(vmem, vmem),
    )(edge_rep, edge2edge, node2edge,
      e_pieces[0], e_pieces[1], e_pieces[2], *e_rest,
      bits,
      node_rep, edge2node,
      n_pieces[0], n_pieces[1], *n_rest)

    # slice the lane padding back off (p.ptensors0b.like only re-wraps).
    return node_out_p[:, :hidden], edge_out_p[:, :hidden]


# --------------------------------------------------------------------------
# Deterministic parameter init (shapes from the module's __init__)
# --------------------------------------------------------------------------
def init_edge_node_params(key, hidden_dim):
    h = hidden_dim
    inner = h * _INNER_MLP_MULT

    def mlp_params(k):
        k1, k2, k3, k4, k5, k6 = jax.random.split(k, 6)
        w1 = jax.random.normal(k1, (7 * h, inner), jnp.float32) / jnp.sqrt(7.0 * h)
        g1 = 1.0 + 0.1 * jax.random.normal(k2, (1, inner), jnp.float32)
        b1 = 0.1 * jax.random.normal(k3, (1, inner), jnp.float32)
        w2 = jax.random.normal(k4, (inner, h), jnp.float32) / jnp.sqrt(float(inner))
        g2 = 1.0 + 0.1 * jax.random.normal(k5, (1, h), jnp.float32)
        b2 = 0.1 * jax.random.normal(k6, (1, h), jnp.float32)
        return (w1, g1, b1, w2, g2, b2)

    k_node, k_edge = jax.random.split(key, 2)
    return {
        "node_mlp": mlp_params(k_node),
        "edge_mlp": mlp_params(k_edge),
        # epsilon1/epsilon2 exist in the module but are never used in forward.
        "epsilon1": jnp.zeros((), jnp.float32),
        "epsilon2": jnp.zeros((), jnp.float32),
    }


if __name__ == "__main__":
    key = jax.random.PRNGKey(0)
    hidden_dim = 32
    dropout_rate = 0.1
    n_nodes = 16

    # Deterministic simple graph: 16-cycle + 8 chords (24 undirected edges).
    ring = [(i, (i + 1) % n_nodes) for i in range(n_nodes)]
    chords = [(i, (i + 3) % n_nodes) for i in range(0, n_nodes, 2)]
    edges = jnp.array(ring + chords, dtype=jnp.int32)          # (24, 2)
    n_edges = edges.shape[0]

    k1, k2, k3, k4 = jax.random.split(key, 4)
    node_rep = jax.random.normal(k1, (n_nodes, hidden_dim), jnp.float32)      # (16, 32)
    edge_rep = jax.random.normal(k2, (2 * n_edges, hidden_dim), jnp.float32)  # (48, 32)
    params = init_edge_node_params(k3, hidden_dim)

    node_out, edge_out = edge_node_forward(
        node_rep, edge_rep, edges, n_nodes, params,
        dropout_rate=dropout_rate, rng_key=k4)
    jax.block_until_ready((node_out, edge_out))

    assert node_out.shape == (n_nodes, hidden_dim)
    assert edge_out.shape == (2 * n_edges, hidden_dim)
    assert jnp.all(jnp.isfinite(node_out)) and jnp.all(jnp.isfinite(edge_out))
    print("KERNEL_OK")
</pallas_src>

<mosaic_0001>
module attributes {stable_mosaic.version = 11 : i64} {
  func.func @_edge_node_kernel(%arg0: memref<48x32xf32, #tpu.memory_space<vmem>>, %arg1: memref<48x128xf32, #tpu.memory_space<vmem>>, %arg2: memref<48x64xf32, #tpu.memory_space<vmem>>, %arg3: memref<32x128xbf16, #tpu.memory_space<vmem>>, %arg4: memref<128x128xbf16, #tpu.memory_space<vmem>>, %arg5: memref<64x128xbf16, #tpu.memory_space<vmem>>, %arg6: memref<1x128xf32, #tpu.memory_space<vmem>>, %arg7: memref<1x128xf32, #tpu.memory_space<vmem>>, %arg8: memref<128x128xbf16, #tpu.memory_space<vmem>>, %arg9: memref<1x128xf32, #tpu.memory_space<vmem>>, %arg10: memref<1x128xf32, #tpu.memory_space<vmem>>, %arg11: memref<48x128xi32, #tpu.memory_space<vmem>>, %arg12: memref<16x32xf32, #tpu.memory_space<vmem>>, %arg13: memref<16x192xf32, #tpu.memory_space<vmem>>, %arg14: memref<32x128xbf16, #tpu.memory_space<vmem>>, %arg15: memref<192x128xbf16, #tpu.memory_space<vmem>>, %arg16: memref<1x128xf32, #tpu.memory_space<vmem>>, %arg17: memref<1x128xf32, #tpu.memory_space<vmem>>, %arg18: memref<128x128xbf16, #tpu.memory_space<vmem>>, %arg19: memref<1x128xf32, #tpu.memory_space<vmem>>, %arg20: memref<1x128xf32, #tpu.memory_space<vmem>>, %arg21: memref<48x128xf32, #tpu.memory_space<vmem>>, %arg22: memref<16x128xf32, #tpu.memory_space<vmem>>) attributes {dimension_semantics = [], scalar_prefetch = 0 : i64, scratch_operands = 0 : i64, tpu.core_type = #tpu.core_type<tc>} {
    %c0 = arith.constant 0 : index
    %c0_0 = arith.constant 0 : index
    %0 = vector.load %arg0[%c0, %c0_0] : memref<48x32xf32, #tpu.memory_space<vmem>>, vector<48x32xf32>
    %1 = arith.truncf %0 : vector<48x32xf32> to vector<48x32xbf16>
    %c0_1 = arith.constant 0 : index
    %c0_2 = arith.constant 0 : index
    %2 = vector.load %arg3[%c0_1, %c0_2] : memref<32x128xbf16, #tpu.memory_space<vmem>>, vector<32x128xbf16>
    %cst = arith.constant dense<0.000000e+00> : vector<48x128xf32>
    %3 = tpu.matmul %1, %2, %cst {dimension_numbers = #tpu.dot_dimension_numbers<[1], [0], [0], [1], [0, 0, 1, 1], [], []>} : vector<48x32xbf16>, vector<32x128xbf16>, vector<48x128xf32> -> vector<48x128xf32>
    %c0_3 = arith.constant 0 : index
    %c0_4 = arith.constant 0 : index
    %4 = vector.load %arg1[%c0_3, %c0_4] : memref<48x128xf32, #tpu.memory_space<vmem>>, vector<48x128xf32>
    %5 = arith.truncf %4 : vector<48x128xf32> to vector<48x128xbf16>
    %c0_5 = arith.constant 0 : index
    %c0_6 = arith.constant 0 : index
    %6 = vector.load %arg4[%c0_5, %c0_6] : memref<128x128xbf16, #tpu.memory_space<vmem>>, vector<128x128xbf16>
    %cst_7 = arith.constant dense<0.000000e+00> : vector<48x128xf32>
    %7 = tpu.matmul %5, %6, %cst_7 {dimension_numbers = #tpu.dot_dimension_numbers<[1], [0], [0], [1], [0, 0, 1, 1], [], []>} : vector<48x128xbf16>, vector<128x128xbf16>, vector<48x128xf32> -> vector<48x128xf32>
    %8 = arith.addf %3, %7 : vector<48x128xf32>
    %c0_8 = arith.constant 0 : index
    %c0_9 = arith.constant 0 : index
    %9 = vector.load %arg2[%c0_8, %c0_9] : memref<48x64xf32, #tpu.memory_space<vmem>>, vector<48x64xf32>
    %10 = arith.truncf %9 : vector<48x64xf32> to vector<48x64xbf16>
    %c0_10 = arith.constant 0 : index
    %c0_11 = arith.constant 0 : index
    %11 = vector.load %arg5[%c0_10, %c0_11] : memref<64x128xbf16, #tpu.memory_space<vmem>>, vector<64x128xbf16>
    %cst_12 = arith.constant dense<0.000000e+00> : vector<48x128xf32>
    %12 = tpu.matmul %10, %11, %cst_12 {dimension_numbers = #tpu.dot_dimension_numbers<[1], [0], [0], [1], [0, 0, 1, 1], [], []>} : vector<48x64xbf16>, vector<64x128xbf16>, vector<48x128xf32> -> vector<48x128xf32>
    %13 = arith.addf %8, %12 : vector<48x128xf32>
    %cst_13 = arith.constant dense<0.000000e+00> : vector<128xf32>
    %14 = vector.multi_reduction <add>, %13, %cst_13 [0] : vector<48x128xf32> to vector<128xf32>
    %15 = vector.shape_cast %14 : vector<128xf32> to vector<1x128xf32>
    %cst_14 = arith.constant 4.800000e+01 : f32
    %16 = vector.broadcast %cst_14 : f32 to vector<1x128xf32>
    %17 = arith.divf %15, %16 : vector<1x128xf32>
    %18 = arith.mulf %13, %13 : vector<48x128xf32>
    %cst_15 = arith.constant dense<0.000000e+00> : vector<128xf32>
    %19 = vector.multi_reduction <add>, %18, %cst_15 [0] : vector<48x128xf32> to vector<128xf32>
    %20 = vector.shape_cast %19 : vector<128xf32> to vector<1x128xf32>
    %cst_16 = arith.constant 4.800000e+01 : f32
    %21 = vector.broadcast %cst_16 : f32 to vector<1x128xf32>
    %22 = arith.divf %20, %21 : vector<1x128xf32>
    %23 = arith.mulf %17, %17 : vector<1x128xf32>
    %24 = arith.subf %22, %23 : vector<1x128xf32>
    %25 = vector.broadcast %17 : vector<1x128xf32> to vector<48x128xf32>
    %26 = arith.subf %13, %25 : vector<48x128xf32>
    %cst_17 = arith.constant 9.99999974E-6 : f32
    %27 = vector.broadcast %cst_17 : f32 to vector<1x128xf32>
    %28 = arith.addf %24, %27 : vector<1x128xf32>
    %29 = math.rsqrt %28 : vector<1x128xf32>
    %30 = vector.broadcast %29 : vector<1x128xf32> to vector<48x128xf32>
    %31 = arith.mulf %26, %30 : vector<48x128xf32>
    %c0_18 = arith.constant 0 : index
    %c0_19 = arith.constant 0 : index
    %32 = vector.load %arg6[%c0_18, %c0_19] : memref<1x128xf32, #tpu.memory_space<vmem>>, vector<1x128xf32>
    %33 = vector.broadcast %32 : vector<1x128xf32> to vector<48x128xf32>
    %34 = arith.mulf %31, %33 : vector<48x128xf32>
    %c0_20 = arith.constant 0 : index
    %c0_21 = arith.constant 0 : index
    %35 = vector.load %arg7[%c0_20, %c0_21] : memref<1x128xf32, #tpu.memory_space<vmem>>, vector<1x128xf32>
    %36 = vector.broadcast %35 : vector<1x128xf32> to vector<48x128xf32>
    %37 = arith.addf %34, %36 : vector<48x128xf32>
    %cst_22 = arith.constant 0.000000e+00 : f32
    %38 = vector.broadcast %cst_22 : f32 to vector<48x128xf32>
    %39 = arith.maximumf %37, %38 : vector<48x128xf32>
    %40 = arith.truncf %39 : vector<48x128xf32> to vector<48x128xbf16>
    %c0_23 = arith.constant 0 : index
    %c0_24 = arith.constant 0 : index
    %41 = vector.load %arg8[%c0_23, %c0_24] : memref<128x128xbf16, #tpu.memory_space<vmem>>, vector<128x128xbf16>
    %cst_25 = arith.constant dense<0.000000e+00> : vector<48x128xf32>
    %42 = tpu.matmul %40, %41, %cst_25 {dimension_numbers = #tpu.dot_dimension_numbers<[1], [0], [0], [1], [0, 0, 1, 1], [], []>} : vector<48x128xbf16>, vector<128x128xbf16>, vector<48x128xf32> -> vector<48x128xf32>
    %cst_26 = arith.constant dense<0.000000e+00> : vector<128xf32>
    %43 = vector.multi_reduction <add>, %42, %cst_26 [0] : vector<48x128xf32> to vector<128xf32>
    %44 = vector.shape_cast %43 : vector<128xf32> to vector<1x128xf32>
    %cst_27 = arith.constant 4.800000e+01 : f32
    %45 = vector.broadcast %cst_27 : f32 to vector<1x128xf32>
    %46 = arith.divf %44, %45 : vector<1x128xf32>
    %47 = arith.mulf %42, %42 : vector<48x128xf32>
    %cst_28 = arith.constant dense<0.000000e+00> : vector<128xf32>
    %48 = vector.multi_reduction <add>, %47, %cst_28 [0] : vector<48x128xf32> to vector<128xf32>
    %49 = vector.shape_cast %48 : vector<128xf32> to vector<1x128xf32>
    %cst_29 = arith.constant 4.800000e+01 : f32
    %50 = vector.broadcast %cst_29 : f32 to vector<1x128xf32>
    %51 = arith.divf %49, %50 : vector<1x128xf32>
    %52 = arith.mulf %46, %46 : vector<1x128xf32>
    %53 = arith.subf %51, %52 : vector<1x128xf32>
    %54 = vector.broadcast %46 : vector<1x128xf32> to vector<48x128xf32>
    %55 = arith.subf %42, %54 : vector<48x128xf32>
    %cst_30 = arith.constant 9.99999974E-6 : f32
    %56 = vector.broadcast %cst_30 : f32 to vector<1x128xf32>
    %57 = arith.addf %53, %56 : vector<1x128xf32>
    %58 = math.rsqrt %57 : vector<1x128xf32>
    %59 = vector.broadcast %58 : vector<1x128xf32> to vector<48x128xf32>
    %60 = arith.mulf %55, %59 : vector<48x128xf32>
    %c0_31 = arith.constant 0 : index
    %c0_32 = arith.constant 0 : index
    %61 = vector.load %arg9[%c0_31, %c0_32] : memref<1x128xf32, #tpu.memory_space<vmem>>, vector<1x128xf32>
    %62 = vector.broadcast %61 : vector<1x128xf32> to vector<48x128xf32>
    %63 = arith.mulf %60, %62 : vector<48x128xf32>
    %c0_33 = arith.constant 0 : index
    %c0_34 = arith.constant 0 : index
    %64 = vector.load %arg10[%c0_33, %c0_34] : memref<1x128xf32, #tpu.memory_space<vmem>>, vector<1x128xf32>
    %65 = vector.broadcast %64 : vector<1x128xf32> to vector<48x128xf32>
    %66 = arith.addf %63, %65 : vector<48x128xf32>
    %cst_35 = arith.constant 0.000000e+00 : f32
    %67 = vector.broadcast %cst_35 : f32 to vector<48x128xf32>
    %68 = arith.maximumf %66, %67 : vector<48x128xf32>
    %c0_36 = arith.constant 0 : index
    %c0_37 = arith.constant 0 : index
    %69 = vector.load %arg11[%c0_36, %c0_37] : memref<48x128xi32, #tpu.memory_space<vmem>>, vector<48x128xi32>
    %c429496730_i32 = arith.constant 429496730 : i32
    %70 = vector.broadcast %c429496730_i32 : i32 to vector<48x128xi32>
    %71 = arith.cmpi uge, %69, %70 : vector<48x128xi32>
    %cst_38 = arith.constant 1.11111116 : f32
    %72 = vector.broadcast %cst_38 : f32 to vector<48x128xf32>
    %73 = arith.mulf %68, %72 : vector<48x128xf32>
    %cst_39 = arith.constant 0.000000e+00 : f32
    %74 = vector.broadcast %cst_39 : f32 to vector<48x128xf32>
    %75 = arith.select %71, %73, %74 : vector<48x128xi1>, vector<48x128xf32>
    %c0_40 = arith.constant 0 : index
    %c0_41 = arith.constant 0 : index
    %76 = vector.load %arg21[%c0_40, %c0_41] : memref<48x128xf32, #tpu.memory_space<vmem>>, vector<48x128xf32>
    tpu.vector_store %arg21[%c0_40, %c0_41], %75 {strides = array<i32>} : memref<48x128xf32, #tpu.memory_space<vmem>>, vector<48x128xf32>,
    %c0_42 = arith.constant 0 : index
    %c0_43 = arith.constant 0 : index
    %77 = vector.load %arg12[%c0_42, %c0_43] : memref<16x32xf32, #tpu.memory_space<vmem>>, vector<16x32xf32>
    %78 = arith.truncf %77 : vector<16x32xf32> to vector<16x32xbf16>
    %c0_44 = arith.constant 0 : index
    %c0_45 = arith.constant 0 : index
    %79 = vector.load %arg14[%c0_44, %c0_45] : memref<32x128xbf16, #tpu.memory_space<vmem>>, vector<32x128xbf16>
    %cst_46 = arith.constant dense<0.000000e+00> : vector<16x128xf32>
    %80 = tpu.matmul %78, %79, %cst_46 {dimension_numbers = #tpu.dot_dimension_numbers<[1], [0], [0], [1], [0, 0, 1, 1], [], []>} : vector<16x32xbf16>, vector<32x128xbf16>, vector<16x128xf32> -> vector<16x128xf32>
    %c0_47 = arith.constant 0 : index
    %c0_48 = arith.constant 0 : index
    %81 = vector.load %arg13[%c0_47, %c0_48] : memref<16x192xf32, #tpu.memory_space<vmem>>, vector<16x192xf32>
    %82 = arith.truncf %81 : vector<16x192xf32> to vector<16x192xbf16>
    %c0_49 = arith.constant 0 : index
    %c0_50 = arith.constant 0 : index
    %83 = vector.load %arg15[%c0_49, %c0_50] : memref<192x128xbf16, #tpu.memory_space<vmem>>, vector<192x128xbf16>
    %cst_51 = arith.constant dense<0.000000e+00> : vector<16x128xf32>
    %84 = tpu.matmul %82, %83, %cst_51 {dimension_numbers = #tpu.dot_dimension_numbers<[1], [0], [0], [1], [0, 0, 1, 1], [], []>} : vector<16x192xbf16>, vector<192x128xbf16>, vector<16x128xf32> -> vector<16x128xf32>
    %85 = arith.addf %80, %84 : vector<16x128xf32>
    %cst_52 = arith.constant dense<0.000000e+00> : vector<128xf32>
    %86 = vector.multi_reduction <add>, %85, %cst_52 [0] : vector<16x128xf32> to vector<128xf32>
    %87 = vector.shape_cast %86 : vector<128xf32> to vector<1x128xf32>
    %cst_53 = arith.constant 1.600000e+01 : f32
    %88 = vector.broadcast %cst_53 : f32 to vector<1x128xf32>
    %89 = arith.divf %87, %88 : vector<1x128xf32>
    %90 = arith.mulf %85, %85 : vector<16x128xf32>
    %cst_54 = arith.constant dense<0.000000e+00> : vector<128xf32>
    %91 = vector.multi_reduction <add>, %90, %cst_54 [0] : vector<16x128xf32> to vector<128xf32>
    %92 = vector.shape_cast %91 : vector<128xf32> to vector<1x128xf32>
    %cst_55 = arith.constant 1.600000e+01 : f32
    %93 = vector.broadcast %cst_55 : f32 to vector<1x128xf32>
    %94 = arith.divf %92, %93 : vector<1x128xf32>
    %95 = arith.mulf %89, %89 : vector<1x128xf32>
    %96 = arith.subf %94, %95 : vector<1x128xf32>
    %97 = vector.broadcast %89 : vector<1x128xf32> to vector<16x128xf32>
    %98 = arith.subf %85, %97 : vector<16x128xf32>
    %cst_56 = arith.constant 9.99999974E-6 : f32
    %99 = vector.broadcast %cst_56 : f32 to vector<1x128xf32>
    %100 = arith.addf %96, %99 : vector<1x128xf32>
    %101 = math.rsqrt %100 : vector<1x128xf32>
    %102 = vector.broadcast %101 : vector<1x128xf32> to vector<16x128xf32>
    %103 = arith.mulf %98, %102 : vector<16x128xf32>
    %c0_57 = arith.constant 0 : index
    %c0_58 = arith.constant 0 : index
    %104 = vector.load %arg16[%c0_57, %c0_58] : memref<1x128xf32, #tpu.memory_space<vmem>>, vector<1x128xf32>
    %105 = vector.broadcast %104 : vector<1x128xf32> to vector<16x128xf32>
    %106 = arith.mulf %103, %105 : vector<16x128xf32>
    %c0_59 = arith.constant 0 : index
    %c0_60 = arith.constant 0 : index
    %107 = vector.load %arg17[%c0_59, %c0_60] : memref<1x128xf32, #tpu.memory_space<vmem>>, vector<1x128xf32>
    %108 = vector.broadcast %107 : vector<1x128xf32> to vector<16x128xf32>
    %109 = arith.addf %106, %108 : vector<16x128xf32>
    %cst_61 = arith.constant 0.000000e+00 : f32
    %110 = vector.broadcast %cst_61 : f32 to vector<16x128xf32>
    %111 = arith.maximumf %109, %110 : vector<16x128xf32>
    %112 = arith.truncf %111 : vector<16x128xf32> to vector<16x128xbf16>
    %c0_62 = arith.constant 0 : index
    %c0_63 = arith.constant 0 : index
    %113 = vector.load %arg18[%c0_62, %c0_63] : memref<128x128xbf16, #tpu.memory_space<vmem>>, vector<128x128xbf16>
    %cst_64 = arith.constant dense<0.000000e+00> : vector<16x128xf32>
    %114 = tpu.matmul %112, %113, %cst_64 {dimension_numbers = #tpu.dot_dimension_numbers<[1], [0], [0], [1], [0, 0, 1, 1], [], []>} : vector<16x128xbf16>, vector<128x128xbf16>, vector<16x128xf32> -> vector<16x128xf32>
    %cst_65 = arith.constant dense<0.000000e+00> : vector<128xf32>
    %115 = vector.multi_reduction <add>, %114, %cst_65 [0] : vector<16x128xf32> to vector<128xf32>
    %116 = vector.shape_cast %115 : vector<128xf32> to vector<1x128xf32>
    %cst_66 = arith.constant 1.600000e+01 : f32
    %117 = vector.broadcast %cst_66 : f32 to vector<1x128xf32>
    %118 = arith.divf %116, %117 : vector<1x128xf32>
    %119 = arith.mulf %114, %114 : vector<16x128xf32>
    %cst_67 = arith.constant dense<0.000000e+00> : vector<128xf32>
    %120 = vector.multi_reduction <add>, %119, %cst_67 [0] : vector<16x128xf32> to vector<128xf32>
    %121 = vector.shape_cast %120 : vector<128xf32> to vector<1x128xf32>
    %cst_68 = arith.constant 1.600000e+01 : f32
    %122 = vector.broadcast %cst_68 : f32 to vector<1x128xf32>
    %123 = arith.divf %121, %122 : vector<1x128xf32>
    %124 = arith.mulf %118, %118 : vector<1x128xf32>
    %125 = arith.subf %123, %124 : vector<1x128xf32>
    %126 = vector.broadcast %118 : vector<1x128xf32> to vector<16x128xf32>
    %127 = arith.subf %114, %126 : vector<16x128xf32>
    %cst_69 = arith.constant 9.99999974E-6 : f32
    %128 = vector.broadcast %cst_69 : f32 to vector<1x128xf32>
    %129 = arith.addf %125, %128 : vector<1x128xf32>
    %130 = math.rsqrt %129 : vector<1x128xf32>
    %131 = vector.broadcast %130 : vector<1x128xf32> to vector<16x128xf32>
    %132 = arith.mulf %127, %131 : vector<16x128xf32>
    %c0_70 = arith.constant 0 : index
    %c0_71 = arith.constant 0 : index
    %133 = vector.load %arg19[%c0_70, %c0_71] : memref<1x128xf32, #tpu.memory_space<vmem>>, vector<1x128xf32>
    %134 = vector.broadcast %133 : vector<1x128xf32> to vector<16x128xf32>
    %135 = arith.mulf %132, %134 : vector<16x128xf32>
    %c0_72 = arith.constant 0 : index
    %c0_73 = arith.constant 0 : index
    %136 = vector.load %arg20[%c0_72, %c0_73] : memref<1x128xf32, #tpu.memory_space<vmem>>, vector<1x128xf32>
    %137 = vector.broadcast %136 : vector<1x128xf32> to vector<16x128xf32>
    %138 = arith.addf %135, %137 : vector<16x128xf32>
    %cst_74 = arith.constant 0.000000e+00 : f32
    %139 = vector.broadcast %cst_74 : f32 to vector<16x128xf32>
    %140 = arith.maximumf %138, %139 : vector<16x128xf32>
    %c0_75 = arith.constant 0 : index
    %c0_76 = arith.constant 0 : index
    %141 = vector.load %arg22[%c0_75, %c0_76] : memref<16x128xf32, #tpu.memory_space<vmem>>, vector<16x128xf32>
    tpu.vector_store %arg22[%c0_75, %c0_76], %140 {strides = array<i32>} : memref<16x128xf32, #tpu.memory_space<vmem>>, vector<16x128xf32>,
    return
  }
}

</mosaic_0001>

<llo_original>
// kernel: eq.46
$region0: #{eq.46}
  %s0 = inlined_call_operand.vmem [shape: s32[24,2], index: 0, kind: input, shape index: {}]
  %s1 = inlined_call_operand.vmem [shape: s32[48], index: 1, kind: output, shape index: {}]
  $region1: #{eq.46} parent=0
    #allocation0 [shape = 'u8[4096]{0}', space=vmem, size = 0x1000, scoped, tag = 'scoped mem for output reshape']
    %v2 = vld [vmem:[%s0] sm:$0x1]
    %vm3 = vcmask 15360
    %4 = vst.msk [vmem:[#allocation0] sm:$0x1] %vm3, %v2
    %s5 = scalar_lea.vmem %s0, 23
    %v6 = vld [vmem:[%s5] sm:$0x1]
    %7 = vrot.lane.b32.xlu0 %v6, 46
    %v8 = vpop.permute.xlu0 %7
    %vm9 = vcmask 392560
    %10 = vst.msk [vmem:[#allocation0] sm:$0x1] %vm9, %v8
    %s11 = scalar_lea.vmem %s0, 22
    %v12 = vld [vmem:[%s11] sm:$0x1]
    %13 = vrot.lane.b32.xlu0 %v12, 44
    %v14 = vpop.permute.xlu0 %13
    %vm15 = vcmask 376160
    %16 = vst.msk [vmem:[#allocation0] sm:$0x1] %vm15, %v14
    %s17 = scalar_lea.vmem %s0, 21
    %v18 = vld [vmem:[%s17] sm:$0x1]
    %19 = vrot.lane.b32.xlu0 %v18, 42
    %v20 = vpop.permute.xlu0 %19
    %vm21 = vcmask 359760
    %22 = vst.msk [vmem:[#allocation0] sm:$0x1] %vm21, %v20
    %s23 = scalar_lea.vmem %s0, 20
    %v24 = vld [vmem:[%s23] sm:$0x1]
    %25 = vrot.lane.b32.xlu0 %v24, 40
    %v26 = vpop.permute.xlu0 %25
    %vm27 = vcmask 343360
    %28 = vst.msk [vmem:[#allocation0] sm:$0x1] %vm27, %v26
    %s29 = scalar_lea.vmem %s0, 19
    %v30 = vld [vmem:[%s29] sm:$0x1]
    %31 = vrot.lane.b32.xlu0 %v30, 38
    %v32 = vpop.permute.xlu0 %31
    %vm33 = vcmask 326960
    %34 = vst.msk [vmem:[#allocation0] sm:$0x1] %vm33, %v32
    %s35 = scalar_lea.vmem %s0, 18
    %v36 = vld [vmem:[%s35] sm:$0x1]
    %37 = vrot.lane.b32.xlu0 %v36, 36
    %v38 = vpop.permute.xlu0 %37
    %vm39 = vcmask 310560
    %40 = vst.msk [vmem:[#allocation0] sm:$0x1] %vm39, %v38
    %s41 = scalar_lea.vmem %s0, 17
    %v42 = vld [vmem:[%s41] sm:$0x1]
    %43 = vrot.lane.b32.xlu0 %v42, 34
    %v44 = vpop.permute.xlu0 %43
    %vm45 = vcmask 294160
    %46 = vst.msk [vmem:[#allocation0] sm:$0x1] %vm45, %v44
    %s47 = scalar_lea.vmem %s0, 16
    %v48 = vld [vmem:[%s47] sm:$0x1]
    %49 = vrot.lane.b32.xlu0 %v48, 32
    %v50 = vpop.permute.xlu0 %49
    %vm51 = vcmask 277760
    %52 = vst.msk [vmem:[#allocation0] sm:$0x1] %vm51, %v50
    %s53 = scalar_lea.vmem %s0, 15
    %v54 = vld [vmem:[%s53] sm:$0x1]
    %55 = vrot.lane.b32.xlu0 %v54, 30
    %v56 = vpop.permute.xlu0 %55
    %vm57 = vcmask 261360
    %58 = vst.msk [vmem:[#allocation0] sm:$0x1] %vm57, %v56
    %s59 = scalar_lea.vmem %s0, 14
    %v60 = vld [vmem:[%s59] sm:$0x1]
    %61 = vrot.lane.b32.xlu0 %v60, 28
    %v62 = vpop.permute.xlu0 %61
    %vm63 = vcmask 244960
    %64 = vst.msk [vmem:[#allocation0] sm:$0x1] %vm63, %v62
    %s65 = scalar_lea.vmem %s0, 13
    %v66 = vld [vmem:[%s65] sm:$0x1]
    %67 = vrot.lane.b32.xlu0 %v66, 26
    %v68 = vpop.permute.xlu0 %67
    %vm69 = vcmask 228560
    %70 = vst.msk [vmem:[#allocation0] sm:$0x1] %vm69, %v68
    %s71 = scalar_lea.vmem %s0, 12
    %v72 = vld [vmem:[%s71] sm:$0x1]
    %73 = vrot.lane.b32.xlu0 %v72, 24
    %v74 = vpop.permute.xlu0 %73
    %vm75 = vcmask 212160
    %76 = vst.msk [vmem:[#allocation0] sm:$0x1] %vm75, %v74
    %s77 = scalar_lea.vmem %s0, 11
    %v78 = vld [vmem:[%s77] sm:$0x1]
    %79 = vrot.lane.b32.xlu0 %v78, 22
    %v80 = vpop.permute.xlu0 %79
    %vm81 = vcmask 195760
    %82 = vst.msk [vmem:[#allocation0] sm:$0x1] %vm81, %v80
    %s83 = scalar_lea.vmem %s0, 10
    %v84 = vld [vmem:[%s83] sm:$0x1]
    %85 = vrot.lane.b32.xlu0 %v84, 20
    %v86 = vpop.permute.xlu0 %85
    %vm87 = vcmask 179360
    %88 = vst.msk [vmem:[#allocation0] sm:$0x1] %vm87, %v86
    %s89 = scalar_lea.vmem %s0, 9
    %v90 = vld [vmem:[%s89] sm:$0x1]
    %91 = vrot.lane.b32.xlu0 %v90, 18
    %v92 = vpop.permute.xlu0 %91
    %vm93 = vcmask 162960
    %94 = vst.msk [vmem:[#allocation0] sm:$0x1] %vm93, %v92
    %s95 = scalar_lea.vmem %s0, 8
    %v96 = vld [vmem:[%s95] sm:$0x1]
    %97 = vrot.lane.b32.xlu0 %v96, 16
    %v98 = vpop.permute.xlu0 %97
    %vm99 = vcmask 146560
    %100 = vst.msk [vmem:[#allocation0] sm:$0x1] %vm99, %v98
    %s101 = scalar_lea.vmem %s0, 7
    %v102 = vld [vmem:[%s101] sm:$0x1]
    %103 = vrot.lane.b32.xlu0 %v102, 14
    %v104 = vpop.permute.xlu0 %103
    %vm105 = vcmask 130160
    %106 = vst.msk [vmem:[#allocation0] sm:$0x1] %vm105, %v104
    %s107 = scalar_lea.vmem %s0, 6
    %v108 = vld [vmem:[%s107] sm:$0x1]
    %109 = vrot.lane.b32.xlu0 %v108, 12
    %v110 = vpop.permute.xlu0 %109
    %vm111 = vcmask 113760
    %112 = vst.msk [vmem:[#allocation0] sm:$0x1] %vm111, %v110
    %s113 = scalar_lea.vmem %s0, 5
    %v114 = vld [vmem:[%s113] sm:$0x1]
    %115 = vrot.lane.b32.xlu0 %v114, 10
    %v116 = vpop.permute.xlu0 %115
    %vm117 = vcmask 97360
    %118 = vst.msk [vmem:[#allocation0] sm:$0x1] %vm117, %v116
    %s119 = scalar_lea.vmem %s0, 4
    %v120 = vld [vmem:[%s119] sm:$0x1]
    %121 = vrot.lane.b32.xlu0 %v120, 8
    %v122 = vpop.permute.xlu0 %121
    %vm123 = vcmask 80960
    %124 = vst.msk [vmem:[#allocation0] sm:$0x1] %vm123, %v122
    %s125 = scalar_lea.vmem %s0, 3
    %v126 = vld [vmem:[%s125] sm:$0x1]
    %127 = vrot.lane.b32.xlu0 %v126, 6
    %v128 = vpop.permute.xlu0 %127
    %vm129 = vcmask 64560
    %130 = vst.msk [vmem:[#allocation0] sm:$0x1] %vm129, %v128
    %s131 = scalar_lea.vmem %s0, 2
    %v132 = vld [vmem:[%s131] sm:$0x1]
    %133 = vrot.lane.b32.xlu0 %v132, 4
    %v134 = vpop.permute.xlu0 %133
    %vm135 = vcmask 48160
    %136 = vst.msk [vmem:[#allocation0] sm:$0x1] %vm135, %v134
    %s137 = scalar_lea.vmem %s0, 1
    %v138 = vld [vmem:[%s137] sm:$0x1]
    %139 = vrot.lane.b32.xlu0 %v138, 2
    %v140 = vpop.permute.xlu0 %139
    %vm141 = vcmask 31760
    %142 = vst.msk [vmem:[#allocation0] sm:$0x1] %vm141, %v140
    %s144 = sshll.u32 1, 1
    %s145 = ssub.s32 %s144, 1
    %v147 = vld [vmem:[#allocation0] sm:%s145]
    %s148 = sshll.u32 1, 1
    %s149 = ssub.s32 %s148, 1
    %150 = vst [vmem:[%s1] sm:%s149] %v147

// kernel: edge_node_forward.1
$region0: #{edge_node_forward.1}
  #allocation0 [shape = 'u32[]', space=smem, size = 0x4, offset = 0x4, fixed_abs, tag = 'smem constant byte address 0x4 - core index']
  #allocation1 [shape = 'u32[144,128]{1,0:T(1,128)}', space=vmem, size = 0x12000, scoped, tag = 'internal scratch']
  %s0 = inlined_call_operand.vmem [shape: f32[48,32], index: 0, kind: input, shape index: {}]
  %s1 = inlined_call_operand.vmem [shape: f32[48,128], index: 1, kind: input, shape index: {}]
  %s2 = inlined_call_operand.vmem [shape: f32[48,64], index: 2, kind: input, shape index: {}]
  %s3 = inlined_call_operand.vmem [shape: bf16[32,128], index: 3, kind: input, shape index: {}]
  %s4 = inlined_call_operand.vmem [shape: bf16[128,128], index: 4, kind: input, shape index: {}]
  %s5 = inlined_call_operand.vmem [shape: bf16[64,128], index: 5, kind: input, shape index: {}]
  %s6 = inlined_call_operand.vmem [shape: f32[1,128], index: 6, kind: input, shape index: {}]
  %s7 = inlined_call_operand.vmem [shape: f32[1,128], index: 7, kind: input, shape index: {}]
  %s8 = inlined_call_operand.vmem [shape: bf16[128,128], index: 8, kind: input, shape index: {}]
  %s9 = inlined_call_operand.vmem [shape: f32[1,128], index: 9, kind: input, shape index: {}]
  %s10 = inlined_call_operand.vmem [shape: f32[1,128], index: 10, kind: input, shape index: {}]
  %s11 = inlined_call_operand.vmem [shape: u32[48,128], index: 11, kind: input, shape index: {}]
  %s12 = inlined_call_operand.vmem [shape: f32[16,32], index: 12, kind: input, shape index: {}]
  %s13 = inlined_call_operand.vmem [shape: f32[16,192], index: 13, kind: input, shape index: {}]
  %s14 = inlined_call_operand.vmem [shape: bf16[32,128], index: 14, kind: input, shape index: {}]
  %s15 = inlined_call_operand.vmem [shape: bf16[192,128], index: 15, kind: input, shape index: {}]
  %s16 = inlined_call_operand.vmem [shape: f32[1,128], index: 16, kind: input, shape index: {}]
  %s17 = inlined_call_operand.vmem [shape: f32[1,128], index: 17, kind: input, shape index: {}]
  %s18 = inlined_call_operand.vmem [shape: bf16[128,128], index: 18, kind: input, shape index: {}]
  %s19 = inlined_call_operand.vmem [shape: f32[1,128], index: 19, kind: input, shape index: {}]
  %s20 = inlined_call_operand.vmem [shape: f32[1,128], index: 20, kind: input, shape index: {}]
  %s21 = inlined_call_operand.vmem [shape: f32[48,128], index: 21, kind: output, shape index: {0}]
  %s22 = inlined_call_operand.hbm [shape: f32[16,128], index: 22, kind: output, shape index: {1}]
  %23 = xla_tuple %s21, %s22
  %s24 = sld [smem:[#allocation0]]
  $region102: #{edge_node_forward.1} parent=0
    _
  %s26 = ssub.s32 1, %s24
  %s27 = scalar_select 0, %s26, %s24
  $region1: #{edge_node_forward.1} parent=0
    #allocation2 [shape = 'u8[8192]{0}', space=vmem, size = 0x2000, scoped, tag = 'output window, operand 1, single buffered']
    #allocation3 [shape = 's32[1]{0}', space=sflag, size = 0x4, scoped, tag = 'scoped memory for edge_node_forward.1']
    %28 = vsyncpa [#allocation3], 0
    // Predicated region
    $region2: #{edge_node_forward.1} parent=1 // pred_check
      _
    $region3: #{edge_node_forward.1} parent=1 // pred_check_branch
      %30 = sbr.rel (0) target = $region5
    $region4: #{edge_node_forward.1} parent=1 // pred_region
      _
    $region5: #{edge_node_forward.1} parent=1 // pred_fallthru
      _
    // Predicated region
    $region6: #{edge_node_forward.1} parent=1 // pred_check
      _
    $region7: #{edge_node_forward.1} parent=1 // pred_check_branch
      %32 = sbr.rel (0) target = $region9
    $region8: #{edge_node_forward.1} parent=1 // pred_region
      _
    $region9: #{edge_node_forward.1} parent=1 // pred_fallthru
      _
    // Predicated region
    $region10: #{edge_node_forward.1} parent=1 // pred_check
      _
    $region11: #{edge_node_forward.1} parent=1 // pred_check_branch
      %34 = sbr.rel (0) target = $region13
    $region12: #{edge_node_forward.1} parent=1 // pred_region
      _
    $region13: #{edge_node_forward.1} parent=1 // pred_fallthru
      _
    // Predicated region
    $region14: #{edge_node_forward.1} parent=1 // pred_check
      _
    $region15: #{edge_node_forward.1} parent=1 // pred_check_branch
      %36 = sbr.rel (0) target = $region17
    $region16: #{edge_node_forward.1} parent=1 // pred_region
      _
    $region17: #{edge_node_forward.1} parent=1 // pred_fallthru
      _
    // Predicated region
    $region18: #{edge_node_forward.1} parent=1 // pred_check
      _
    $region19: #{edge_node_forward.1} parent=1 // pred_check_branch
      %38 = sbr.rel (0) target = $region21
    $region20: #{edge_node_forward.1} parent=1 // pred_region
      _
    $region21: #{edge_node_forward.1} parent=1 // pred_fallthru
      _
    // Predicated region
    $region22: #{edge_node_forward.1} parent=1 // pred_check
      _
    $region23: #{edge_node_forward.1} parent=1 // pred_check_branch
      %40 = sbr.rel (0) target = $region25
    $region24: #{edge_node_forward.1} parent=1 // pred_region
      _
    $region25: #{edge_node_forward.1} parent=1 // pred_fallthru
      _
    // Predicated region
    $region26: #{edge_node_forward.1} parent=1 // pred_check
      _
    $region27: #{edge_node_forward.1} parent=1 // pred_check_branch
      %42 = sbr.rel (0) target = $region29
    $region28: #{edge_node_forward.1} parent=1 // pred_region
      _
    $region29: #{edge_node_forward.1} parent=1 // pred_fallthru
      _
    // Predicated region
    $region30: #{edge_node_forward.1} parent=1 // pred_check
      _
    $region31: #{edge_node_forward.1} parent=1 // pred_check_branch
      %44 = sbr.rel (0) target = $region33
    $region32: #{edge_node_forward.1} parent=1 // pred_region
      _
    $region33: #{edge_node_forward.1} parent=1 // pred_fallthru
      _
    // Predicated region
    $region34: #{edge_node_forward.1} parent=1 // pred_check
      _
    $region35: #{edge_node_forward.1} parent=1 // pred_check_branch
      %46 = sbr.rel (0) target = $region37
    $region36: #{edge_node_forward.1} parent=1 // pred_region
      _
    $region37: #{edge_node_forward.1} parent=1 // pred_fallthru
      _
    // Predicated region
    $region38: #{edge_node_forward.1} parent=1 // pred_check
      _
    $region39: #{edge_node_forward.1} parent=1 // pred_check_branch
      %48 = sbr.rel (0) target = $region41
    $region40: #{edge_node_forward.1} parent=1 // pred_region
      _
    $region41: #{edge_node_forward.1} parent=1 // pred_fallthru
      _
    // Predicated region
    $region42: #{edge_node_forward.1} parent=1 // pred_check
      _
    $region43: #{edge_node_forward.1} parent=1 // pred_check_branch
      %50 = sbr.rel (0) target = $region45
    $region44: #{edge_node_forward.1} parent=1 // pred_region
      _
    $region45: #{edge_node_forward.1} parent=1 // pred_fallthru
      _
    // Predicated region
    $region46: #{edge_node_forward.1} parent=1 // pred_check
      _
    $region47: #{edge_node_forward.1} parent=1 // pred_check_branch
      %52 = sbr.rel (0) target = $region49
    $region48: #{edge_node_forward.1} parent=1 // pred_region
      _
    $region49: #{edge_node_forward.1} parent=1 // pred_fallthru
      _
    // Predicated region
    $region50: #{edge_node_forward.1} parent=1 // pred_check
      _
    $region51: #{edge_node_forward.1} parent=1 // pred_check_branch
      %54 = sbr.rel (0) target = $region53
    $region52: #{edge_node_forward.1} parent=1 // pred_region
      _
    $region53: #{edge_node_forward.1} parent=1 // pred_fallthru
      _
    // Predicated region
    $region54: #{edge_node_forward.1} parent=1 // pred_check
      _
    $region55: #{edge_node_forward.1} parent=1 // pred_check_branch
      %56 = sbr.rel (0) target = $region57
    $region56: #{edge_node_forward.1} parent=1 // pred_region
      _
    $region57: #{edge_node_forward.1} parent=1 // pred_fallthru
      _
    // Predicated region
    $region58: #{edge_node_forward.1} parent=1 // pred_check
      _
    $region59: #{edge_node_forward.1} parent=1 // pred_check_branch
      %58 = sbr.rel (0) target = $region61
    $region60: #{edge_node_forward.1} parent=1 // pred_region
      _
    $region61: #{edge_node_forward.1} parent=1 // pred_fallthru
      _
    // Predicated region
    $region62: #{edge_node_forward.1} parent=1 // pred_check
      _
    $region63: #{edge_node_forward.1} parent=1 // pred_check_branch
      %60 = sbr.rel (0) target = $region65
    $region64: #{edge_node_forward.1} parent=1 // pred_region
      _
    $region65: #{edge_node_forward.1} parent=1 // pred_fallthru
      _
    // Predicated region
    $region66: #{edge_node_forward.1} parent=1 // pred_check
      _
    $region67: #{edge_node_forward.1} parent=1 // pred_check_branch
      %62 = sbr.rel (0) target = $region69
    $region68: #{edge_node_forward.1} parent=1 // pred_region
      _
    $region69: #{edge_node_forward.1} parent=1 // pred_fallthru
      _
    // Predicated region
    $region70: #{edge_node_forward.1} parent=1 // pred_check
      _
    $region71: #{edge_node_forward.1} parent=1 // pred_check_branch
      %64 = sbr.rel (0) target = $region73
    $region72: #{edge_node_forward.1} parent=1 // pred_region
      _
    $region73: #{edge_node_forward.1} parent=1 // pred_fallthru
      _
    // Predicated region
    $region74: #{edge_node_forward.1} parent=1 // pred_check
      _
    $region75: #{edge_node_forward.1} parent=1 // pred_check_branch
      %66 = sbr.rel (0) target = $region77
    $region76: #{edge_node_forward.1} parent=1 // pred_region
      _
    $region77: #{edge_node_forward.1} parent=1 // pred_fallthru
      _
    // Predicated region
    $region78: #{edge_node_forward.1} parent=1 // pred_check
      _
    $region79: #{edge_node_forward.1} parent=1 // pred_check_branch
      %68 = sbr.rel (0) target = $region81
    $region80: #{edge_node_forward.1} parent=1 // pred_region
      _
    $region81: #{edge_node_forward.1} parent=1 // pred_fallthru
      _
    // Predicated region
    $region82: #{edge_node_forward.1} parent=1 // pred_check
      _
    $region83: #{edge_node_forward.1} parent=1 // pred_check_branch
      %70 = sbr.rel (0) target = $region85
    $region84: #{edge_node_forward.1} parent=1 // pred_region
      _
    $region85: #{edge_node_forward.1} parent=1 // pred_fallthru
      _
    %v72 = vld [vmem:[%s0] sm:$0xff]
    %v73 = vld [vmem:[%s0 + $0x8] sm:$0xff]
    %v74 = vld [vmem:[%s0 + $0x10] sm:$0xff]
    %v75 = vld [vmem:[%s0 + $0x18] sm:$0xff]
    %v76 = vld [vmem:[%s0 + $0x20] sm:$0xff]
    %v77 = vld [vmem:[%s0 + $0x28] sm:$0xff]
    %v78 = vpack.c.bf16 %v73, %v72
    %v79 = vpack.c.bf16 %v75, %v74
    %v80 = vpack.c.bf16 %v77, %v76
    %v81 = vld [vmem:[%s3] sm:$0xf]
    %v82 = vld [vmem:[%s3 + $0x4] sm:$0xf]
    %v83 = vld [vmem:[%s3 + $0x8] sm:$0xf]
    %v84 = vld [vmem:[%s3 + $0xc] sm:$0xf]
    %v85 = vld [vmem:[%s1] sm:$0xff]
    %v86 = vld [vmem:[%s1 + $0x8] sm:$0xff]
    %v87 = vld [vmem:[%s1 + $0x10] sm:$0xff]
    %v88 = vld [vmem:[%s1 + $0x18] sm:$0xff]
    %v89 = vld [vmem:[%s1 + $0x20] sm:$0xff]
    %v90 = vld [vmem:[%s1 + $0x28] sm:$0xff]
    %v91 = vpack.c.bf16 %v86, %v85
    %v92 = vpack.c.bf16 %v88, %v87
    %v93 = vpack.c.bf16 %v90, %v89
    %v94 = vld [vmem:[%s4] sm:$0xf]
    %v95 = vld [vmem:[%s4 + $0x4] sm:$0xf]
    %v96 = vld [vmem:[%s4 + $0x8] sm:$0xf]
    %v97 = vld [vmem:[%s4 + $0xc] sm:$0xf]
    %v98 = vld [vmem:[%s4 + $0x10] sm:$0xf]
    %v99 = vld [vmem:[%s4 + $0x14] sm:$0xf]
    %v100 = vld [vmem:[%s4 + $0x18] sm:$0xf]
    %v101 = vld [vmem:[%s4 + $0x1c] sm:$0xf]
    %v102 = vld [vmem:[%s4 + $0x20] sm:$0xf]
    %v103 = vld [vmem:[%s4 + $0x24] sm:$0xf]
    %v104 = vld [vmem:[%s4 + $0x28] sm:$0xf]
    %v105 = vld [vmem:[%s4 + $0x2c] sm:$0xf]
    %v106 = vld [vmem:[%s4 + $0x30] sm:$0xf]
    %v107 = vld [vmem:[%s4 + $0x34] sm:$0xf]
    %v108 = vld [vmem:[%s4 + $0x38] sm:$0xf]
    %v109 = vld [vmem:[%s4 + $0x3c] sm:$0xf]
    %v126 = vunpack.c.l.b16 %v94
    %v127 = vunpack.c.l.b16 %v95
    %v128 = vunpack.c.l.b16 %v96
    %v129 = vunpack.c.l.b16 %v97
    %v130 = vunpack.c.l.b16 %v98
    %v131 = vunpack.c.l.b16 %v99
    %v132 = vunpack.c.l.b16 %v100
    %v133 = vunpack.c.l.b16 %v101
    %v134 = vunpack.c.l.b16 %v102
    %v135 = vunpack.c.l.b16 %v103
    %v136 = vunpack.c.l.b16 %v104
    %v137 = vunpack.c.l.b16 %v105
    %v138 = vunpack.c.l.b16 %v106
    %v139 = vunpack.c.l.b16 %v107
    %v140 = vunpack.c.l.b16 %v108
    %v141 = vunpack.c.l.b16 %v109
    %v142 = vpack.c.b16 %v127, %v126
    %v143 = vpack.c.b16 %v129, %v128
    %v144 = vpack.c.b16 %v131, %v130
    %v145 = vpack.c.b16 %v133, %v132
    %v146 = vpack.c.b16 %v135, %v134
    %v147 = vpack.c.b16 %v137, %v136
    %v148 = vpack.c.b16 %v139, %v138
    %v149 = vpack.c.b16 %v141, %v140
    %158 = vmatprep.subr.bf16.mxu0 0
    %159 = vmatpush1.bf16.msra.mxu0 %v149
    %160 = vmatprep.subr.bf16.mxu0 0
    %161 = vmatpush1.bf16.msra.mxu0 %v148
    %162 = vmatprep.subr.bf16.mxu0 0
    %163 = vmatpush1.bf16.msra.mxu0 %v147
    %164 = vmatprep.subr.bf16.mxu0 0
    %165 = vmatpush1.bf16.msra.mxu0 %v146
    %166 = vmatprep.subr.bf16.mxu0 0
    %167 = vmatpush1.bf16.msra.mxu0 %v145
    %168 = vmatprep.subr.bf16.mxu0 0
    %169 = vmatpush1.bf16.msra.mxu0 %v144
    %170 = vmatprep.subr.bf16.mxu0 0
    %171 = vmatpush1.bf16.msra.mxu0 %v143
    %172 = vmatprep.subr.bf16.mxu0 0
    %173 = vmatpush1.bf16.msra.mxu0 %v142
    %174 = vmatprep.subr.bf16.mxu0 0
    %175 = vmatpush2.bf16.msra.mxu0 0
    %176 = vmatprep.subr.bf16.mxu0 0
    %177 = vmatpush2.bf16.msra.mxu0 0
    %178 = vmatprep.subr.bf16.mxu0 0
    %179 = vmatpush2.bf16.msra.mxu0 0
    %180 = vmatprep.subr.bf16.mxu0 0
    %181 = vmatpush2.bf16.msra.mxu0 0
    %182 = vmatprep.subr.bf16.mxu0 0
    %183 = vmatpush2.bf16.msra.mxu0 0
    %184 = vmatprep.subr.bf16.mxu0 0
    %185 = vmatpush2.bf16.msra.mxu0 0
    %186 = vmatprep.subr.bf16.mxu0 0
    %187 = vmatpush2.bf16.msra.mxu0 0
    %188 = vmatprep.subr.bf16.mxu0 0
    %189 = vmatpush2.bf16.msra.mxu0 0
    %190 = vmatprep.mubr.bf16.mxu0 0
    %191 = vmatmul.mubr.bf16.gmra.mxu0 %v91
    %v192 = vpop.f32.mrf.mxu0
    %v193 = vadd.f32 0.0, %v192
    %v194 = vpop.f32.mrf.mxu0
    %v195 = vpop.f32.mrf.mxu0
    %v196 = vadd.f32 0.0, %v195
    %v197 = vpop.f32.mrf.mxu0
    %198 = vmatprep.mubr.bf16.mxu0 0
    %199 = vmatmul.mubr.bf16.gmra.mxu0 %v92
    %v200 = vpop.f32.mrf.mxu0
    %v201 = vadd.f32 0.0, %v200
    %v202 = vpop.f32.mrf.mxu0
    %v203 = vpop.f32.mrf.mxu0
    %v204 = vadd.f32 0.0, %v203
    %v205 = vpop.f32.mrf.mxu0
    %206 = vmatprep.mubr.bf16.mxu0 0
    %207 = vmatmul.mubr.bf16.gmra.mxu0 %v93
    %v208 = vpop.f32.mrf.mxu0
    %v209 = vadd.f32 0.0, %v208
    %v210 = vpop.f32.mrf.mxu0
    %v211 = vpop.f32.mrf.mxu0
    %v212 = vadd.f32 0.0, %v211
    %v213 = vpop.f32.mrf.mxu0
    %214 = vdwg.mxu0
    %v219 = vunpack.c.l.b16 %v81
    %v220 = vunpack.c.l.b16 %v82
    %v221 = vunpack.c.l.b16 %v83
    %v222 = vunpack.c.l.b16 %v84
    %v223 = vpack.c.b16 %v220, %v219
    %v224 = vpack.c.b16 %v222, %v221
    %vm227 = vcmask 261120
    %v229 = vsel %vm227, %v78, 0
    %v232 = vsel %vm227, %v79, 0
    %v235 = vsel %vm227, %v80, 0
    %237 = vmatprep.subr.bf16.mxu0 0
    %238 = vmatpush1.bf16.msra.mxu0 0
    %239 = vmatprep.subr.bf16.mxu0 0
    %240 = vmatpush1.bf16.msra.mxu0 0
    %241 = vmatprep.subr.bf16.mxu0 0
    %242 = vmatpush1.bf16.msra.mxu0 0
    %243 = vmatprep.subr.bf16.mxu0 0
    %244 = vmatpush1.bf16.msra.mxu0 0
    %245 = vmatprep.subr.bf16.mxu0 0
    %246 = vmatpush1.bf16.msra.mxu0 0
    %247 = vmatprep.subr.bf16.mxu0 0
    %248 = vmatpush1.bf16.msra.mxu0 0
    %249 = vmatprep.subr.bf16.mxu0 0
    %250 = vmatpush1.bf16.msra.mxu0 %v224
    %251 = vmatprep.subr.bf16.mxu0 0
    %252 = vmatpush1.bf16.msra.mxu0 %v223
    %253 = vmatprep.subr.bf16.mxu0 0
    %254 = vmatpush2.bf16.msra.mxu0 0
    %255 = vmatprep.subr.bf16.mxu0 0
    %256 = vmatpush2.bf16.msra.mxu0 0
    %257 = vmatprep.subr.bf16.mxu0 0
    %258 = vmatpush2.bf16.msra.mxu0 0
    %259 = vmatprep.subr.bf16.mxu0 0
    %260 = vmatpush2.bf16.msra.mxu0 0
    %261 = vmatprep.subr.bf16.mxu0 0
    %262 = vmatpush2.bf16.msra.mxu0 0
    %263 = vmatprep.subr.bf16.mxu0 0
    %264 = vmatpush2.bf16.msra.mxu0 0
    %265 = vmatprep.subr.bf16.mxu0 0
    %266 = vmatpush2.bf16.msra.mxu0 0
    %267 = vmatprep.subr.bf16.mxu0 0
    %268 = vmatpush2.bf16.msra.mxu0 0
    %269 = vmatprep.mubr.bf16.mxu0 0
    %270 = vmatmul.mubr.bf16.gmra.mxu0 %v229
    %v271 = vpop.f32.mrf.mxu0
    %v272 = vadd.f32 %v193, %v271
    %v273 = vpop.f32.mrf.mxu0
    %v274 = vpop.f32.mrf.mxu0
    %v275 = vadd.f32 %v196, %v274
    %v276 = vpop.f32.mrf.mxu0
    %277 = vmatprep.mubr.bf16.mxu0 0
    %278 = vmatmul.mubr.bf16.gmra.mxu0 %v232
    %v279 = vpop.f32.mrf.mxu0
    %v280 = vadd.f32 %v201, %v279
    %v281 = vpop.f32.mrf.mxu0
    %v282 = vpop.f32.mrf.mxu0
    %v283 = vadd.f32 %v204, %v282
    %v284 = vpop.f32.mrf.mxu0
    %285 = vmatprep.mubr.bf16.mxu0 0
    %286 = vmatmul.mubr.bf16.gmra.mxu0 %v235
    %v287 = vpop.f32.mrf.mxu0
    %v288 = vadd.f32 %v209, %v287
    %v289 = vpop.f32.mrf.mxu0
    %v290 = vpop.f32.mrf.mxu0
    %v291 = vadd.f32 %v212, %v290
    %v292 = vpop.f32.mrf.mxu0
    %293 = vdwg.mxu0
    %v294 = vld [vmem:[%s2] sm:$0xff]
    %v295 = vld [vmem:[%s2 + $0x8] sm:$0xff]
    %v296 = vld [vmem:[%s2 + $0x10] sm:$0xff]
    %v297 = vld [vmem:[%s2 + $0x18] sm:$0xff]
    %v298 = vld [vmem:[%s2 + $0x20] sm:$0xff]
    %v299 = vld [vmem:[%s2 + $0x28] sm:$0xff]
    %v300 = vpack.c.bf16 %v295, %v294
    %v301 = vpack.c.bf16 %v297, %v296
    %v302 = vpack.c.bf16 %v299, %v298
    %v303 = vld [vmem:[%s5] sm:$0xf]
    %v304 = vld [vmem:[%s5 + $0x4] sm:$0xf]
    %v305 = vld [vmem:[%s5 + $0x8] sm:$0xf]
    %v306 = vld [vmem:[%s5 + $0xc] sm:$0xf]
    %v307 = vld [vmem:[%s5 + $0x10] sm:$0xf]
    %v308 = vld [vmem:[%s5 + $0x14] sm:$0xf]
    %v309 = vld [vmem:[%s5 + $0x18] sm:$0xf]
    %v310 = vld [vmem:[%s5 + $0x1c] sm:$0xf]
    %v319 = vunpack.c.l.b16 %v303
    %v320 = vunpack.c.l.b16 %v304
    %v321 = vunpack.c.l.b16 %v305
    %v322 = vunpack.c.l.b16 %v306
    %v323 = vunpack.c.l.b16 %v307
    %v324 = vunpack.c.l.b16 %v308
    %v325 = vunpack.c.l.b16 %v309
    %v326 = vunpack.c.l.b16 %v310
    %v327 = vpack.c.b16 %v320, %v319
    %v328 = vpack.c.b16 %v322, %v321
    %v329 = vpack.c.b16 %v324, %v323
    %v330 = vpack.c.b16 %v326, %v325
    %vm335 = vcmask 523264
    %v337 = vsel %vm335, %v300, 0
    %v340 = vsel %vm335, %v301, 0
    %v343 = vsel %vm335, %v302, 0
    %345 = vmatprep.subr.bf16.mxu0 0
    %346 = vmatpush1.bf16.msra.mxu0 0
    %347 = vmatprep.subr.bf16.mxu0 0
    %348 = vmatpush1.bf16.msra.mxu0 0
    %349 = vmatprep.subr.bf16.mxu0 0
    %350 = vmatpush1.bf16.msra.mxu0 0
    %351 = vmatprep.subr.bf16.mxu0 0
    %352 = vmatpush1.bf16.msra.mxu0 0
    %353 = vmatprep.subr.bf16.mxu0 0
    %354 = vmatpush1.bf16.msra.mxu0 %v330
    %355 = vmatprep.subr.bf16.mxu0 0
    %356 = vmatpush1.bf16.msra.mxu0 %v329
    %357 = vmatprep.subr.bf16.mxu0 0
    %358 = vmatpush1.bf16.msra.mxu0 %v328
    %359 = vmatprep.subr.bf16.mxu0 0
    %360 = vmatpush1.bf16.msra.mxu0 %v327
    %361 = vmatprep.subr.bf16.mxu0 0
    %362 = vmatpush2.bf16.msra.mxu0 0
    %363 = vmatprep.subr.bf16.mxu0 0
    %364 = vmatpush2.bf16.msra.mxu0 0
    %365 = vmatprep.subr.bf16.mxu0 0
    %366 = vmatpush2.bf16.msra.mxu0 0
    %367 = vmatprep.subr.bf16.mxu0 0
    %368 = vmatpush2.bf16.msra.mxu0 0
    %369 = vmatprep.subr.bf16.mxu0 0
    %370 = vmatpush2.bf16.msra.mxu0 0
    %371 = vmatprep.subr.bf16.mxu0 0
    %372 = vmatpush2.bf16.msra.mxu0 0
    %373 = vmatprep.subr.bf16.mxu0 0
    %374 = vmatpush2.bf16.msra.mxu0 0
    %375 = vmatprep.subr.bf16.mxu0 0
    %376 = vmatpush2.bf16.msra.mxu0 0
    %377 = vmatprep.mubr.bf16.mxu0 0
    %378 = vmatmul.mubr.bf16.gmra.mxu0 %v337
    %v379 = vpop.f32.mrf.mxu0
    %v380 = vadd.f32 0.0, %v379
    %v381 = vpop.f32.mrf.mxu0
    %v382 = vpop.f32.mrf.mxu0
    %v383 = vadd.f32 0.0, %v382
    %v384 = vpop.f32.mrf.mxu0
    %385 = vmatprep.mubr.bf16.mxu0 0
    %386 = vmatmul.mubr.bf16.gmra.mxu0 %v340
    %v387 = vpop.f32.mrf.mxu0
    %v388 = vadd.f32 0.0, %v387
    %v389 = vpop.f32.mrf.mxu0
    %v390 = vpop.f32.mrf.mxu0
    %v391 = vadd.f32 0.0, %v390
    %v392 = vpop.f32.mrf.mxu0
    %393 = vmatprep.mubr.bf16.mxu0 0
    %394 = vmatmul.mubr.bf16.gmra.mxu0 %v343
    %v395 = vpop.f32.mrf.mxu0
    %v396 = vadd.f32 0.0, %v395
    %v397 = vpop.f32.mrf.mxu0
    %v398 = vpop.f32.mrf.mxu0
    %v399 = vadd.f32 0.0, %v398
    %v400 = vpop.f32.mrf.mxu0
    %401 = vdwg.mxu0
    %v402 = vadd.f32 %v272, %v380
    %v403 = vadd.f32 %v275, %v383
    %v404 = vadd.f32 %v280, %v388
    %v405 = vadd.f32 %v283, %v391
    %v406 = vadd.f32 %v288, %v396
    %v407 = vadd.f32 %v291, %v399
    %v408 = vadd.f32 %v402, %v403
    %v409 = vadd.f32 %v408, %v404
    %v410 = vadd.f32 %v409, %v405
    %v411 = vadd.f32 %v410, %v406
    %v412 = vadd.f32 %v411, %v407
    %v413 = vrot.slane %v412, 4
    %v414 = vadd.f32 %v412, %v413
    %v415 = vrot.slane %v414, 2
    %v416 = vadd.f32 %v414, %v415
    %v417 = vrot.slane %v416, 1
    %v418 = vadd.f32 %v416, %v417
    %v419 = vrcp.pop 48.0
    %v420 = vmul.f32 %v418, %v419
    %v421 = vmul.f32 %v402, %v402
    %v422 = vmul.f32 %v403, %v403
    %v423 = vmul.f32 %v404, %v404
    %v424 = vmul.f32 %v405, %v405
    %v425 = vmul.f32 %v406, %v406
    %v426 = vmul.f32 %v407, %v407
    %v427 = vadd.f32 %v421, %v422
    %v428 = vadd.f32 %v427, %v423
    %v429 = vadd.f32 %v428, %v424
    %v430 = vadd.f32 %v429, %v425
    %v431 = vadd.f32 %v430, %v426
    %v432 = vrot.slane %v431, 4
    %v433 = vadd.f32 %v431, %v432
    %v434 = vrot.slane %v433, 2
    %v435 = vadd.f32 %v433, %v434
    %v436 = vrot.slane %v435, 1
    %v437 = vadd.f32 %v435, %v436
    %v438 = vmul.f32 %v437, %v419
    %v439 = vmul.f32 %v420, %v420
    %v440 = vsub.f32 %v438, %v439
    %v441 = vsub.f32 %v402, %v420
    %v442 = vsub.f32 %v403, %v420
    %v443 = vsub.f32 %v404, %v420
    %v444 = vsub.f32 %v405, %v420
    %v445 = vsub.f32 %v406, %v420
    %v446 = vsub.f32 %v407, %v420
    %v447 = vadd.f32 %v440, 1e-05
    %v448 = vrsqrt.pop %v447
    %v449 = vmul.f32 %v441, %v448
    %v450 = vmul.f32 %v442, %v448
    %v451 = vmul.f32 %v443, %v448
    %v452 = vmul.f32 %v444, %v448
    %v453 = vmul.f32 %v445, %v448
    %v454 = vmul.f32 %v446, %v448
    %v455 = vld [vmem:[%s6] sm:$0x1]
    %v457 = vlaneseq
    %v458 = vshrl.u32 %v457, 7
    %v459 = vsub.s32 0, %v458
    %v460 = vrot.slane %v455, %v459
    %v462 = vmul.f32 %v449, %v460
    %v463 = vmul.f32 %v450, %v460
    %v464 = vmul.f32 %v451, %v460
    %v465 = vmul.f32 %v452, %v460
    %v466 = vmul.f32 %v453, %v460
    %v467 = vmul.f32 %v454, %v460
    %v468 = vld [vmem:[%s7] sm:$0x1]
    %v470 = vlaneseq
    %v471 = vshrl.u32 %v470, 7
    %v472 = vsub.s32 0, %v471
    %v473 = vrot.slane %v468, %v472
    %v475 = vadd.f32 %v462, %v473
    %v476 = vadd.f32 %v463, %v473
    %v477 = vadd.f32 %v464, %v473
    %v478 = vadd.f32 %v465, %v473
    %v479 = vadd.f32 %v466, %v473
    %v480 = vadd.f32 %v467, %v473
    %v481 = vmax.f32 %v475, 0.0
    %v482 = vmax.f32 %v476, 0.0
    %v483 = vmax.f32 %v477, 0.0
    %v484 = vmax.f32 %v478, 0.0
    %v485 = vmax.f32 %v479, 0.0
    %v486 = vmax.f32 %v480, 0.0
    %v487 = vpack.c.bf16 %v482, %v481
    %v488 = vpack.c.bf16 %v484, %v483
    %v489 = vpack.c.bf16 %v486, %v485
    %v490 = vld [vmem:[%s8] sm:$0xf]
    %v491 = vld [vmem:[%s8 + $0x4] sm:$0xf]
    %v492 = vld [vmem:[%s8 + $0x8] sm:$0xf]
    %v493 = vld [vmem:[%s8 + $0xc] sm:$0xf]
    %v494 = vld [vmem:[%s8 + $0x10] sm:$0xf]
    %v495 = vld [vmem:[%s8 + $0x14] sm:$0xf]
    %v496 = vld [vmem:[%s8 + $0x18] sm:$0xf]
    %v497 = vld [vmem:[%s8 + $0x1c] sm:$0xf]
    %v498 = vld [vmem:[%s8 + $0x20] sm:$0xf]
    %v499 = vld [vmem:[%s8 + $0x24] sm:$0xf]
    %v500 = vld [vmem:[%s8 + $0x28] sm:$0xf]
    %v501 = vld [vmem:[%s8 + $0x2c] sm:$0xf]
    %v502 = vld [vmem:[%s8 + $0x30] sm:$0xf]
    %v503 = vld [vmem:[%s8 + $0x34] sm:$0xf]
    %v504 = vld [vmem:[%s8 + $0x38] sm:$0xf]
    %v505 = vld [vmem:[%s8 + $0x3c] sm:$0xf]
    %v522 = vunpack.c.l.b16 %v490
    %v523 = vunpack.c.l.b16 %v491
    %v524 = vunpack.c.l.b16 %v492
    %v525 = vunpack.c.l.b16 %v493
    %v526 = vunpack.c.l.b16 %v494
    %v527 = vunpack.c.l.b16 %v495
    %v528 = vunpack.c.l.b16 %v496
    %v529 = vunpack.c.l.b16 %v497
    %v530 = vunpack.c.l.b16 %v498
    %v531 = vunpack.c.l.b16 %v499
    %v532 = vunpack.c.l.b16 %v500
    %v533 = vunpack.c.l.b16 %v501
    %v534 = vunpack.c.l.b16 %v502
    %v535 = vunpack.c.l.b16 %v503
    %v536 = vunpack.c.l.b16 %v504
    %v537 = vunpack.c.l.b16 %v505
    %v538 = vpack.c.b16 %v523, %v522
    %v539 = vpack.c.b16 %v525, %v524
    %v540 = vpack.c.b16 %v527, %v526
    %v541 = vpack.c.b16 %v529, %v528
    %v542 = vpack.c.b16 %v531, %v530
    %v543 = vpack.c.b16 %v533, %v532
    %v544 = vpack.c.b16 %v535, %v534
    %v545 = vpack.c.b16 %v537, %v536
    %554 = vmatprep.subr.bf16.mxu0 0
    %555 = vmatpush1.bf16.msra.mxu0 %v545
    %556 = vmatprep.subr.bf16.mxu0 0
    %557 = vmatpush1.bf16.msra.mxu0 %v544
    %558 = vmatprep.subr.bf16.mxu0 0
    %559 = vmatpush1.bf16.msra.mxu0 %v543
    %560 = vmatprep.subr.bf16.mxu0 0
    %561 = vmatpush1.bf16.msra.mxu0 %v542
    %562 = vmatprep.subr.bf16.mxu0 0
    %563 = vmatpush1.bf16.msra.mxu0 %v541
    %564 = vmatprep.subr.bf16.mxu0 0
    %565 = vmatpush1.bf16.msra.mxu0 %v540
    %566 = vmatprep.subr.bf16.mxu0 0
    %567 = vmatpush1.bf16.msra.mxu0 %v539
    %568 = vmatprep.subr.bf16.mxu0 0
    %569 = vmatpush1.bf16.msra.mxu0 %v538
    %570 = vmatprep.subr.bf16.mxu0 0
    %571 = vmatpush2.bf16.msra.mxu0 0
    %572 = vmatprep.subr.bf16.mxu0 0
    %573 = vmatpush2.bf16.msra.mxu0 0
    %574 = vmatprep.subr.bf16.mxu0 0
    %575 = vmatpush2.bf16.msra.mxu0 0
    %576 = vmatprep.subr.bf16.mxu0 0
    %577 = vmatpush2.bf16.msra.mxu0 0
    %578 = vmatprep.subr.bf16.mxu0 0
    %579 = vmatpush2.bf16.msra.mxu0 0
    %580 = vmatprep.subr.bf16.mxu0 0
    %581 = vmatpush2.bf16.msra.mxu0 0
    %582 = vmatprep.subr.bf16.mxu0 0
    %583 = vmatpush2.bf16.msra.mxu0 0
    %584 = vmatprep.subr.bf16.mxu0 0
    %585 = vmatpush2.bf16.msra.mxu0 0
    %586 = vmatprep.mubr.bf16.mxu0 0
    %587 = vmatmul.mubr.bf16.gmra.mxu0 %v487
    %v588 = vpop.f32.mrf.mxu0
    %v589 = vadd.f32 0.0, %v588
    %v590 = vpop.f32.mrf.mxu0
    %v591 = vpop.f32.mrf.mxu0
    %v592 = vadd.f32 0.0, %v591
    %v593 = vpop.f32.mrf.mxu0
    %594 = vmatprep.mubr.bf16.mxu0 0
    %595 = vmatmul.mubr.bf16.gmra.mxu0 %v488
    %v596 = vpop.f32.mrf.mxu0
    %v597 = vadd.f32 0.0, %v596
    %v598 = vpop.f32.mrf.mxu0
    %v599 = vpop.f32.mrf.mxu0
    %v600 = vadd.f32 0.0, %v599
    %v601 = vpop.f32.mrf.mxu0
    %602 = vmatprep.mubr.bf16.mxu0 0
    %603 = vmatmul.mubr.bf16.gmra.mxu0 %v489
    %v604 = vpop.f32.mrf.mxu0
    %v605 = vadd.f32 0.0, %v604
    %v606 = vpop.f32.mrf.mxu0
    %v607 = vpop.f32.mrf.mxu0
    %v608 = vadd.f32 0.0, %v607
    %v609 = vpop.f32.mrf.mxu0
    %610 = vdwg.mxu0
    %v611 = vadd.f32 %v589, %v592
    %v612 = vadd.f32 %v611, %v597
    %v613 = vadd.f32 %v612, %v600
    %v614 = vadd.f32 %v613, %v605
    %v615 = vadd.f32 %v614, %v608
    %v616 = vrot.slane %v615, 4
    %v617 = vadd.f32 %v615, %v616
    %v618 = vrot.slane %v617, 2
    %v619 = vadd.f32 %v617, %v618
    %v620 = vrot.slane %v619, 1
    %v621 = vadd.f32 %v619, %v620
    %v622 = vmul.f32 %v621, %v419
    %v623 = vmul.f32 %v589, %v589
    %v624 = vmul.f32 %v592, %v592
    %v625 = vmul.f32 %v597, %v597
    %v626 = vmul.f32 %v600, %v600
    %v627 = vmul.f32 %v605, %v605
    %v628 = vmul.f32 %v608, %v608
    %v629 = vadd.f32 %v623, %v624
    %v630 = vadd.f32 %v629, %v625
    %v631 = vadd.f32 %v630, %v626
    %v632 = vadd.f32 %v631, %v627
    %v633 = vadd.f32 %v632, %v628
    %v634 = vrot.slane %v633, 4
    %v635 = vadd.f32 %v633, %v634
    %v636 = vrot.slane %v635, 2
    %v637 = vadd.f32 %v635, %v636
    %v638 = vrot.slane %v637, 1
    %v639 = vadd.f32 %v637, %v638
    %v640 = vmul.f32 %v639, %v419
    %v641 = vmul.f32 %v622, %v622
    %v642 = vsub.f32 %v640, %v641
    %v643 = vsub.f32 %v589, %v622
    %v644 = vsub.f32 %v592, %v622
    %v645 = vsub.f32 %v597, %v622
    %v646 = vsub.f32 %v600, %v622
    %v647 = vsub.f32 %v605, %v622
    %v648 = vsub.f32 %v608, %v622
    %v649 = vadd.f32 %v642, 1e-05
    %v650 = vrsqrt.pop %v649
    %v651 = vmul.f32 %v643, %v650
    %v652 = vmul.f32 %v644, %v650
    %v653 = vmul.f32 %v645, %v650
    %v654 = vmul.f32 %v646, %v650
    %v655 = vmul.f32 %v647, %v650
    %v656 = vmul.f32 %v648, %v650
    %v657 = vld [vmem:[%s9] sm:$0x1]
    %v659 = vlaneseq
    %v660 = vshrl.u32 %v659, 7
    %v661 = vsub.s32 0, %v660
    %v662 = vrot.slane %v657, %v661
    %v664 = vmul.f32 %v651, %v662
    %v665 = vmul.f32 %v652, %v662
    %v666 = vmul.f32 %v653, %v662
    %v667 = vmul.f32 %v654, %v662
    %v668 = vmul.f32 %v655, %v662
    %v669 = vmul.f32 %v656, %v662
    %v670 = vld [vmem:[%s10] sm:$0x1]
    %v672 = vlaneseq
    %v673 = vshrl.u32 %v672, 7
    %v674 = vsub.s32 0, %v673
    %v675 = vrot.slane %v670, %v674
    %v677 = vadd.f32 %v664, %v675
    %v678 = vadd.f32 %v665, %v675
    %v679 = vadd.f32 %v666, %v675
    %v680 = vadd.f32 %v667, %v675
    %v681 = vadd.f32 %v668, %v675
    %v682 = vadd.f32 %v669, %v675
    %v683 = vmax.f32 %v677, 0.0
    %v684 = vmax.f32 %v678, 0.0
    %v685 = vmax.f32 %v679, 0.0
    %v686 = vmax.f32 %v680, 0.0
    %v687 = vmax.f32 %v681, 0.0
    %v688 = vmax.f32 %v682, 0.0
    %v689 = vld [vmem:[%s11] sm:$0xff]
    %v690 = vld [vmem:[%s11 + $0x8] sm:$0xff]
    %v691 = vld [vmem:[%s11 + $0x10] sm:$0xff]
    %v692 = vld [vmem:[%s11 + $0x18] sm:$0xff]
    %v693 = vld [vmem:[%s11 + $0x20] sm:$0xff]
    %v694 = vld [vmem:[%s11 + $0x28] sm:$0xff]
    %vm695 = vcmp.ge.u32.totalorder %v689, 429496730
    %vm696 = vcmp.ge.u32.totalorder %v690, 429496730
    %vm697 = vcmp.ge.u32.totalorder %v691, 429496730
    %vm698 = vcmp.ge.u32.totalorder %v692, 429496730
    %vm699 = vcmp.ge.u32.totalorder %v693, 429496730
    %vm700 = vcmp.ge.u32.totalorder %v694, 429496730
    %v701 = vmul.f32 %v683, 1.1111112
    %v702 = vmul.f32 %v684, 1.1111112
    %v703 = vmul.f32 %v685, 1.1111112
    %v704 = vmul.f32 %v686, 1.1111112
    %v705 = vmul.f32 %v687, 1.1111112
    %v706 = vmul.f32 %v688, 1.1111112
    %v707 = vsel %vm695, %v701, 0.0
    %v708 = vsel %vm696, %v702, 0.0
    %v709 = vsel %vm697, %v703, 0.0
    %v710 = vsel %vm698, %v704, 0.0
    %v711 = vsel %vm699, %v705, 0.0
    %v712 = vsel %vm700, %v706, 0.0
    %713 = vst [vmem:[%s21] sm:$0xff] %v707
    %714 = vst [vmem:[%s21 + $0x8] sm:$0xff] %v708
    %715 = vst [vmem:[%s21 + $0x10] sm:$0xff] %v709
    %716 = vst [vmem:[%s21 + $0x18] sm:$0xff] %v710
    %717 = vst [vmem:[%s21 + $0x20] sm:$0xff] %v711
    %718 = vst [vmem:[%s21 + $0x28] sm:$0xff] %v712
    %v719 = vld [vmem:[%s12] sm:$0xff]
    %v720 = vld [vmem:[%s12 + $0x8] sm:$0xff]
    %v721 = vpack.c.bf16 %v720, %v719
    %v722 = vld [vmem:[%s14] sm:$0xf]
    %v723 = vld [vmem:[%s14 + $0x4] sm:$0xf]
    %v724 = vld [vmem:[%s14 + $0x8] sm:$0xf]
    %v725 = vld [vmem:[%s14 + $0xc] sm:$0xf]
    %v726 = vld [vmem:[%s13] sm:$0xff]
    %v727 = vld [vmem:[%s13 + $0x8] sm:$0xff]
    %v728 = vld [vmem:[%s13 + $0x10] sm:$0xff]
    %v729 = vld [vmem:[%s13 + $0x18] sm:$0xff]
    %v730 = vpack.c.bf16 %v728, %v726
    %v731 = vpack.c.bf16 %v729, %v727
    %v732 = vld [vmem:[%s15] sm:$0xf]
    %v733 = vld [vmem:[%s15 + $0x4] sm:$0xf]
    %v734 = vld [vmem:[%s15 + $0x8] sm:$0xf]
    %v735 = vld [vmem:[%s15 + $0xc] sm:$0xf]
    %v736 = vld [vmem:[%s15 + $0x10] sm:$0xf]
    %v737 = vld [vmem:[%s15 + $0x14] sm:$0xf]
    %v738 = vld [vmem:[%s15 + $0x18] sm:$0xf]
    %v739 = vld [vmem:[%s15 + $0x1c] sm:$0xf]
    %v740 = vld [vmem:[%s15 + $0x20] sm:$0xf]
    %v741 = vld [vmem:[%s15 + $0x24] sm:$0xf]
    %v742 = vld [vmem:[%s15 + $0x28] sm:$0xf]
    %v743 = vld [vmem:[%s15 + $0x2c] sm:$0xf]
    %v744 = vld [vmem:[%s15 + $0x30] sm:$0xf]
    %v745 = vld [vmem:[%s15 + $0x34] sm:$0xf]
    %v746 = vld [vmem:[%s15 + $0x38] sm:$0xf]
    %v747 = vld [vmem:[%s15 + $0x3c] sm:$0xf]
    %v748 = vld [vmem:[%s15 + $0x40] sm:$0xf]
    %v749 = vld [vmem:[%s15 + $0x44] sm:$0xf]
    %v750 = vld [vmem:[%s15 + $0x48] sm:$0xf]
    %v751 = vld [vmem:[%s15 + $0x4c] sm:$0xf]
    %v752 = vld [vmem:[%s15 + $0x50] sm:$0xf]
    %v753 = vld [vmem:[%s15 + $0x54] sm:$0xf]
    %v754 = vld [vmem:[%s15 + $0x58] sm:$0xf]
    %v755 = vld [vmem:[%s15 + $0x5c] sm:$0xf]
    %v780 = vunpack.c.l.b16 %v732
    %v781 = vunpack.c.l.b16 %v733
    %v782 = vunpack.c.l.b16 %v734
    %v783 = vunpack.c.l.b16 %v735
    %v784 = vunpack.c.l.b16 %v736
    %v785 = vunpack.c.l.b16 %v737
    %v786 = vunpack.c.l.b16 %v738
    %v787 = vunpack.c.l.b16 %v739
    %v788 = vunpack.c.l.b16 %v740
    %v789 = vunpack.c.l.b16 %v741
    %v790 = vunpack.c.l.b16 %v742
    %v791 = vunpack.c.l.b16 %v743
    %v792 = vunpack.c.l.b16 %v744
    %v793 = vunpack.c.l.b16 %v745
    %v794 = vunpack.c.l.b16 %v746
    %v795 = vunpack.c.l.b16 %v747
    %v796 = vunpack.c.l.b16 %v748
    %v797 = vunpack.c.l.b16 %v749
    %v798 = vunpack.c.l.b16 %v750
    %v799 = vunpack.c.l.b16 %v751
    %v800 = vunpack.c.l.b16 %v752
    %v801 = vunpack.c.l.b16 %v753
    %v802 = vunpack.c.l.b16 %v754
    %v803 = vunpack.c.l.b16 %v755
    %v804 = vpack.c.b16 %v781, %v780
    %v805 = vpack.c.b16 %v783, %v782
    %v806 = vpack.c.b16 %v785, %v784
    %v807 = vpack.c.b16 %v787, %v786
    %v808 = vpack.c.b16 %v789, %v788
    %v809 = vpack.c.b16 %v791, %v790
    %v810 = vpack.c.b16 %v793, %v792
    %v811 = vpack.c.b16 %v795, %v794
    %v812 = vpack.c.b16 %v797, %v796
    %v813 = vpack.c.b16 %v799, %v798
    %v814 = vpack.c.b16 %v801, %v800
    %v815 = vpack.c.b16 %v803, %v802
    %v829 = vsel %vm335, %v731, 0
    %831 = vmatprep.subr.bf16.mxu0 0
    %832 = vmatpush1.bf16.msra.mxu0 %v811
    %833 = vmatprep.subr.bf16.mxu0 0
    %834 = vmatpush1.bf16.msra.mxu0 %v810
    %835 = vmatprep.subr.bf16.mxu0 0
    %836 = vmatpush1.bf16.msra.mxu0 %v809
    %837 = vmatprep.subr.bf16.mxu0 0
    %838 = vmatpush1.bf16.msra.mxu0 %v808
    %839 = vmatprep.subr.bf16.mxu0 0
    %840 = vmatpush1.bf16.msra.mxu0 %v807
    %841 = vmatprep.subr.bf16.mxu0 0
    %842 = vmatpush1.bf16.msra.mxu0 %v806
    %843 = vmatprep.subr.bf16.mxu0 0
    %844 = vmatpush1.bf16.msra.mxu0 %v805
    %845 = vmatprep.subr.bf16.mxu0 0
    %846 = vmatpush1.bf16.msra.mxu0 %v804
    %847 = vmatprep.subr.bf16.mxu0 0
    %848 = vmatpush2.bf16.msra.mxu0 0
    %849 = vmatprep.subr.bf16.mxu0 0
    %850 = vmatpush2.bf16.msra.mxu0 0
    %851 = vmatprep.subr.bf16.mxu0 0
    %852 = vmatpush2.bf16.msra.mxu0 0
    %853 = vmatprep.subr.bf16.mxu0 0
    %854 = vmatpush2.bf16.msra.mxu0 0
    %855 = vmatprep.subr.bf16.mxu0 0
    %856 = vmatpush2.bf16.msra.mxu0 %v815
    %857 = vmatprep.subr.bf16.mxu0 0
    %858 = vmatpush2.bf16.msra.mxu0 %v814
    %859 = vmatprep.subr.bf16.mxu0 0
    %860 = vmatpush2.bf16.msra.mxu0 %v813
    %861 = vmatprep.subr.bf16.mxu0 0
    %862 = vmatpush2.bf16.msra.mxu0 %v812
    %863 = vmatprep.mubr.bf16.mxu0 %v829
    %864 = vmatmul.mubr.bf16.gmra.mxu0 %v730
    %v865 = vpop.f32.mrf.mxu0
    %v866 = vadd.f32 0.0, %v865
    %v867 = vpop.f32.mrf.mxu0
    %v868 = vpop.f32.mrf.mxu0
    %v869 = vadd.f32 0.0, %v868
    %v870 = vpop.f32.mrf.mxu0
    %871 = vdwg.mxu0
    %v876 = vunpack.c.l.b16 %v722
    %v877 = vunpack.c.l.b16 %v723
    %v878 = vunpack.c.l.b16 %v724
    %v879 = vunpack.c.l.b16 %v725
    %v880 = vpack.c.b16 %v877, %v876
    %v881 = vpack.c.b16 %v879, %v878
    %v885 = vsel %vm227, %v721, 0
    %887 = vmatprep.subr.bf16.mxu0 0
    %888 = vmatpush1.bf16.msra.mxu0 0
    %889 = vmatprep.subr.bf16.mxu0 0
    %890 = vmatpush1.bf16.msra.mxu0 0
    %891 = vmatprep.subr.bf16.mxu0 0
    %892 = vmatpush1.bf16.msra.mxu0 0
    %893 = vmatprep.subr.bf16.mxu0 0
    %894 = vmatpush1.bf16.msra.mxu0 0
    %895 = vmatprep.subr.bf16.mxu0 0
    %896 = vmatpush1.bf16.msra.mxu0 0
    %897 = vmatprep.subr.bf16.mxu0 0
    %898 = vmatpush1.bf16.msra.mxu0 0
    %899 = vmatprep.subr.bf16.mxu0 0
    %900 = vmatpush1.bf16.msra.mxu0 %v881
    %901 = vmatprep.subr.bf16.mxu0 0
    %902 = vmatpush1.bf16.msra.mxu0 %v880
    %903 = vmatprep.subr.bf16.mxu0 0
    %904 = vmatpush2.bf16.msra.mxu0 0
    %905 = vmatprep.subr.bf16.mxu0 0
    %906 = vmatpush2.bf16.msra.mxu0 0
    %907 = vmatprep.subr.bf16.mxu0 0
    %908 = vmatpush2.bf16.msra.mxu0 0
    %909 = vmatprep.subr.bf16.mxu0 0
    %910 = vmatpush2.bf16.msra.mxu0 0
    %911 = vmatprep.subr.bf16.mxu0 0
    %912 = vmatpush2.bf16.msra.mxu0 0
    %913 = vmatprep.subr.bf16.mxu0 0
    %914 = vmatpush2.bf16.msra.mxu0 0
    %915 = vmatprep.subr.bf16.mxu0 0
    %916 = vmatpush2.bf16.msra.mxu0 0
    %917 = vmatprep.subr.bf16.mxu0 0
    %918 = vmatpush2.bf16.msra.mxu0 0
    %919 = vmatprep.mubr.bf16.mxu0 0
    %920 = vmatmul.mubr.bf16.gmra.mxu0 %v885
    %v921 = vpop.f32.mrf.mxu0
    %v922 = vadd.f32 %v866, %v921
    %v923 = vpop.f32.mrf.mxu0
    %v924 = vpop.f32.mrf.mxu0
    %v925 = vadd.f32 %v869, %v924
    %v926 = vpop.f32.mrf.mxu0
    %927 = vdwg.mxu0
    %v928 = vadd.f32 %v922, %v925
    %v929 = vrot.slane %v928, 4
    %v930 = vadd.f32 %v928, %v929
    %v931 = vrot.slane %v930, 2
    %v932 = vadd.f32 %v930, %v931
    %v933 = vrot.slane %v932, 1
    %v934 = vadd.f32 %v932, %v933
    %v935 = vrcp.pop 16.0
    %v936 = vmul.f32 %v934, %v935
    %v937 = vmul.f32 %v922, %v922
    %v938 = vmul.f32 %v925, %v925
    %v939 = vadd.f32 %v937, %v938
    %v940 = vrot.slane %v939, 4
    %v941 = vadd.f32 %v939, %v940
    %v942 = vrot.slane %v941, 2
    %v943 = vadd.f32 %v941, %v942
    %v944 = vrot.slane %v943, 1
    %v945 = vadd.f32 %v943, %v944
    %v946 = vmul.f32 %v945, %v935
    %v947 = vmul.f32 %v936, %v936
    %v948 = vsub.f32 %v946, %v947
    %v949 = vsub.f32 %v922, %v936
    %v950 = vsub.f32 %v925, %v936
    %v951 = vadd.f32 %v948, 1e-05
    %v952 = vrsqrt.pop %v951
    %v953 = vmul.f32 %v949, %v952
    %v954 = vmul.f32 %v950, %v952
    %v955 = vld [vmem:[%s16] sm:$0x1]
    %v957 = vlaneseq
    %v958 = vshrl.u32 %v957, 7
    %v959 = vsub.s32 0, %v958
    %v960 = vrot.slane %v955, %v959
    %v962 = vmul.f32 %v953, %v960
    %v963 = vmul.f32 %v954, %v960
    %v964 = vld [vmem:[%s17] sm:$0x1]
    %v966 = vlaneseq
    %v967 = vshrl.u32 %v966, 7
    %v968 = vsub.s32 0, %v967
    %v969 = vrot.slane %v964, %v968
    %v971 = vadd.f32 %v962, %v969
    %v972 = vadd.f32 %v963, %v969
    %v973 = vmax.f32 %v971, 0.0
    %v974 = vmax.f32 %v972, 0.0
    %v975 = vpack.c.bf16 %v974, %v973
    %v976 = vld [vmem:[%s18] sm:$0xf]
    %v977 = vld [vmem:[%s18 + $0x4] sm:$0xf]
    %v978 = vld [vmem:[%s18 + $0x8] sm:$0xf]
    %v979 = vld [vmem:[%s18 + $0xc] sm:$0xf]
    %v980 = vld [vmem:[%s18 + $0x10] sm:$0xf]
    %v981 = vld [vmem:[%s18 + $0x14] sm:$0xf]
    %v982 = vld [vmem:[%s18 + $0x18] sm:$0xf]
    %v983 = vld [vmem:[%s18 + $0x1c] sm:$0xf]
    %v984 = vld [vmem:[%s18 + $0x20] sm:$0xf]
    %v985 = vld [vmem:[%s18 + $0x24] sm:$0xf]
    %v986 = vld [vmem:[%s18 + $0x28] sm:$0xf]
    %v987 = vld [vmem:[%s18 + $0x2c] sm:$0xf]
    %v988 = vld [vmem:[%s18 + $0x30] sm:$0xf]
    %v989 = vld [vmem:[%s18 + $0x34] sm:$0xf]
    %v990 = vld [vmem:[%s18 + $0x38] sm:$0xf]
    %v991 = vld [vmem:[%s18 + $0x3c] sm:$0xf]
    %v1008 = vunpack.c.l.b16 %v976
    %v1009 = vunpack.c.l.b16 %v977
    %v1010 = vunpack.c.l.b16 %v978
    %v1011 = vunpack.c.l.b16 %v979
    %v1012 = vunpack.c.l.b16 %v980
    %v1013 = vunpack.c.l.b16 %v981
    %v1014 = vunpack.c.l.b16 %v982
    %v1015 = vunpack.c.l.b16 %v983
    %v1016 = vunpack.c.l.b16 %v984
    %v1017 = vunpack.c.l.b16 %v985
    %v1018 = vunpack.c.l.b16 %v986
    %v1019 = vunpack.c.l.b16 %v987
    %v1020 = vunpack.c.l.b16 %v988
    %v1021 = vunpack.c.l.b16 %v989
    %v1022 = vunpack.c.l.b16 %v990
    %v1023 = vunpack.c.l.b16 %v991
    %v1024 = vpack.c.b16 %v1009, %v1008
    %v1025 = vpack.c.b16 %v1011, %v1010
    %v1026 = vpack.c.b16 %v1013, %v1012
    %v1027 = vpack.c.b16 %v1015, %v1014
    %v1028 = vpack.c.b16 %v1017, %v1016
    %v1029 = vpack.c.b16 %v1019, %v1018
    %v1030 = vpack.c.b16 %v1021, %v1020
    %v1031 = vpack.c.b16 %v1023, %v1022
    %1040 = vmatprep.subr.bf16.mxu0 0
    %1041 = vmatpush1.bf16.msra.mxu0 %v1031
    %1042 = vmatprep.subr.bf16.mxu0 0
    %1043 = vmatpush1.bf16.msra.mxu0 %v1030
    %1044 = vmatprep.subr.bf16.mxu0 0
    %1045 = vmatpush1.bf16.msra.mxu0 %v1029
    %1046 = vmatprep.subr.bf16.mxu0 0
    %1047 = vmatpush1.bf16.msra.mxu0 %v1028
    %1048 = vmatprep.subr.bf16.mxu0 0
    %1049 = vmatpush1.bf16.msra.mxu0 %v1027
    %1050 = vmatprep.subr.bf16.mxu0 0
    %1051 = vmatpush1.bf16.msra.mxu0 %v1026
    %1052 = vmatprep.subr.bf16.mxu0 0
    %1053 = vmatpush1.bf16.msra.mxu0 %v1025
    %1054 = vmatprep.subr.bf16.mxu0 0
    %1055 = vmatpush1.bf16.msra.mxu0 %v1024
    %1056 = vmatprep.subr.bf16.mxu0 0
    %1057 = vmatpush2.bf16.msra.mxu0 0
    %1058 = vmatprep.subr.bf16.mxu0 0
    %1059 = vmatpush2.bf16.msra.mxu0 0
    %1060 = vmatprep.subr.bf16.mxu0 0
    %1061 = vmatpush2.bf16.msra.mxu0 0
    %1062 = vmatprep.subr.bf16.mxu0 0
    %1063 = vmatpush2.bf16.msra.mxu0 0
    %1064 = vmatprep.subr.bf16.mxu0 0
    %1065 = vmatpush2.bf16.msra.mxu0 0
    %1066 = vmatprep.subr.bf16.mxu0 0
    %1067 = vmatpush2.bf16.msra.mxu0 0
    %1068 = vmatprep.subr.bf16.mxu0 0
    %1069 = vmatpush2.bf16.msra.mxu0 0
    %1070 = vmatprep.subr.bf16.mxu0 0
    %1071 = vmatpush2.bf16.msra.mxu0 0
    %1072 = vmatprep.mubr.bf16.mxu0 0
    %1073 = vmatmul.mubr.bf16.gmra.mxu0 %v975
    %v1074 = vpop.f32.mrf.mxu0
    %v1075 = vadd.f32 0.0, %v1074
    %v1076 = vpop.f32.mrf.mxu0
    %v1077 = vpop.f32.mrf.mxu0
    %v1078 = vadd.f32 0.0, %v1077
    %v1079 = vpop.f32.mrf.mxu0
    %1080 = vdwg.mxu0
    %v1081 = vadd.f32 %v1075, %v1078
    %v1082 = vrot.slane %v1081, 4
    %v1083 = vadd.f32 %v1081, %v1082
    %v1084 = vrot.slane %v1083, 2
    %v1085 = vadd.f32 %v1083, %v1084
    %v1086 = vrot.slane %v1085, 1
    %v1087 = vadd.f32 %v1085, %v1086
    %v1088 = vmul.f32 %v1087, %v935
    %v1089 = vmul.f32 %v1075, %v1075
    %v1090 = vmul.f32 %v1078, %v1078
    %v1091 = vadd.f32 %v1089, %v1090
    %v1092 = vrot.slane %v1091, 4
    %v1093 = vadd.f32 %v1091, %v1092
    %v1094 = vrot.slane %v1093, 2
    %v1095 = vadd.f32 %v1093, %v1094
    %v1096 = vrot.slane %v1095, 1
    %v1097 = vadd.f32 %v1095, %v1096
    %v1098 = vmul.f32 %v1097, %v935
    %v1099 = vmul.f32 %v1088, %v1088
    %v1100 = vsub.f32 %v1098, %v1099
    %v1101 = vsub.f32 %v1075, %v1088
    %v1102 = vsub.f32 %v1078, %v1088
    %v1103 = vadd.f32 %v1100, 1e-05
    %v1104 = vrsqrt.pop %v1103
    %v1105 = vmul.f32 %v1101, %v1104
    %v1106 = vmul.f32 %v1102, %v1104
    %v1107 = vld [vmem:[%s19] sm:$0x1]
    %v1109 = vlaneseq
    %v1110 = vshrl.u32 %v1109, 7
    %v1111 = vsub.s32 0, %v1110
    %v1112 = vrot.slane %v1107, %v1111
    %v1114 = vmul.f32 %v1105, %v1112
    %v1115 = vmul.f32 %v1106, %v1112
    %v1116 = vld [vmem:[%s20] sm:$0x1]
    %v1118 = vlaneseq
    %v1119 = vshrl.u32 %v1118, 7
    %v1120 = vsub.s32 0, %v1119
    %v1121 = vrot.slane %v1116, %v1120
    %v1123 = vadd.f32 %v1114, %v1121
    %v1124 = vadd.f32 %v1115, %v1121
    %v1125 = vmax.f32 %v1123, 0.0
    %v1126 = vmax.f32 %v1124, 0.0
    %1127 = vst [vmem:[#allocation2] sm:$0xff] %v1125
    %1128 = vst [vmem:[#allocation2 + $0x8] sm:$0xff] %v1126
    // Predicated region
    $region86: #{edge_node_forward.1} parent=1 // pred_check
      _
    $region87: #{edge_node_forward.1} parent=1 // pred_check_branch
      %1130 = sbr.rel (0) target = $region89
    $region88: #{edge_node_forward.1} parent=1 // pred_region
      _
    $region89: #{edge_node_forward.1} parent=1 // pred_fallthru
      _
    // Predicated region
    $region90: #{edge_node_forward.1} parent=1 // pred_check
      _
    $region91: #{edge_node_forward.1} parent=1 // pred_check_branch
      %1132 = sbr.rel (0) target = $region93
    $region92: #{edge_node_forward.1} parent=1 // pred_region
      %s1134 = ssub.s32 256, 256
      %1135 = vsyncadd [#allocation3], %s1134
      %s1136 = sshll.u32 [#allocation2], 4
      %s1137 = int_to_ptr.vmem [resolvable:$true] %s1136
      %1142 = dma.vmem_to_hbm [thread:$0]  %s1137, 256, %s22, [#allocation3], 128, 128, 8
    $region93: #{edge_node_forward.1} parent=1 // pred_fallthru
      _
    // Predicated region
    $region94: #{edge_node_forward.1} parent=1 // pred_check
      _
    $region95: #{edge_node_forward.1} parent=1 // pred_check_branch
      %1144 = sbr.rel (0) target = $region97
    $region96: #{edge_node_forward.1} parent=1 // pred_region
      _
    $region97: #{edge_node_forward.1} parent=1 // pred_fallthru
      _
    // Predicated region
    $region98: #{edge_node_forward.1} parent=1 // pred_check
      _
    $region99: #{edge_node_forward.1} parent=1 // pred_check_branch
      %1146 = sbr.rel (0) target = $region101
    $region100: #{edge_node_forward.1} parent=1 // pred_region
      %1147 = dma.done [#allocation3], 256
    $region101: #{edge_node_forward.1} parent=1 // pred_fallthru
      _
    %1148 = vsyncpa [#allocation3], 1

</llo_original>
